<compile_context>
chip_gen: v6e
topology: v6e:2x2x1
jax: 0.10.0
libtpu: 0.0.40
codegen_flags: <defaults>
</compile_context>

<pallas_src>
import functools

import numpy as np
import jax
import jax.numpy as jnp
from jax.experimental import pallas as pl
from jax.experimental.pallas import tpu as pltpu


def _downsample_conv_kernel(x_ref, w_ref, b_ref, o_ref, *, OH, OW, C):
    """Implicit-GEMM 3x3 stride-2 conv for one batch image.

    x_ref: (1, OH+1, 2, OW+1, 2*C)   space-to-depth view of the padded NHWC
                                     image: x_ref[0, i, a, j, b*C + c] ==
                                     x_pad[2*i + a, 2*j + b, c]
    w_ref: (9, C, OCp)               per-tap weights, OC padded to 128 lanes
    b_ref: (1, OCp)                  f32 bias (padded)
    o_ref: (1, OH*OW, OCp)           f32 output, lane-dense (OCp % 128 == 0)
    """
    M = OH * OW
    OCp = o_ref.shape[-1]
    acc = jnp.zeros((M, OCp), jnp.float32)

    # 9 taps, fully unrolled: each tap is a contiguous static slice of the
    # VMEM-resident input block followed by an MXU sub-matmul (contraction=C),
    # accumulated in f32.
    for kh in range(3):
        i0, a = kh // 2, kh % 2
        for kw in range(3):
            j0, b = kw // 2, kw % 2
            tap = x_ref[0, i0:i0 + OH, a, j0:j0 + OW, b * C:(b + 1) * C]
            lhs = tap.reshape(M, C)
            acc = acc + jnp.dot(lhs, w_ref[kh * 3 + kw],
                                preferred_element_type=jnp.float32)

    # f32 epilogue (bias add) + full-lane store.
    o_ref[0] = (acc + b_ref[...]).astype(o_ref.dtype)


@functools.partial(jax.jit, static_argnames=("use_bf16",))
def downsample_forward(x_nchw, weight_oihw, bias, *, use_bf16=True):
    """Conv2d(in_c, out_c, kernel_size=3, stride=2, padding=1) forward.

    x_nchw:      (N, C, H, W)  float32 (PyTorch layout)
    weight_oihw: (OC, C, 3, 3) float32 (PyTorch layout)
    bias:        (OC,)         float32
    returns:     (N, OC, OH, OW) float32
    """
    N, C, H, W = x_nchw.shape
    OC = weight_oihw.shape[0]
    OH = (H + 2 - 3) // 2 + 1
    OW = (W + 2 - 3) // 2 + 1
    OCp = ((OC + 127) // 128) * 128          # lane-dense stores (pad OC -> 128k)
    M = OH * OW

    cdtype = jnp.bfloat16 if use_bf16 else x_nchw.dtype

    # ---- glue: NCHW -> NHWC + zero pad (fuses into one copy under jit) ----
    # Pad H/W up to 2*OH+2 / 2*OW+2 so the stride-2 space-to-depth reshape is
    # exact; the extra zero row/col beyond the conv's padding is never read.
    Hp, Wp = 2 * OH + 2, 2 * OW + 2
    x = jnp.transpose(x_nchw, (0, 2, 3, 1))                       # (N, H, W, C)
    x = jnp.pad(x, ((0, 0), (1, Hp - 1 - H), (1, Wp - 1 - W), (0, 0)))
    # Free reshape: x_r[n, i, a, j, b*C + c] == x_pad[n, 2i+a, 2j+b, c].
    x_r = x.reshape(N, OH + 1, 2, OW + 1, 2 * C).astype(cdtype)

    # weights (OC, C, 3, 3) -> (3, 3, C, OC) -> (9, C, OCp); bias -> (1, OCp) f32.
    w = jnp.transpose(weight_oihw, (2, 3, 1, 0)).reshape(9, C, OC)
    w = jnp.pad(w, ((0, 0), (0, 0), (0, OCp - OC))).astype(cdtype)
    b_row = jnp.pad(bias, (0, OCp - OC)).reshape(1, OCp).astype(jnp.float32)

    kernel = functools.partial(_downsample_conv_kernel, OH=OH, OW=OW, C=C)

    out = pl.pallas_call(
        kernel,
        out_shape=jax.ShapeDtypeStruct((N, M, OCp), jnp.float32),
        grid_spec=pltpu.PrefetchScalarGridSpec(
            num_scalar_prefetch=0,
            grid=(N,),   # >= 2 parallel steps for the demo -> feeds both v7x TCs
            in_specs=[
                # one full (padded, space-to-depth) image per grid step
                pl.BlockSpec((1, OH + 1, 2, OW + 1, 2 * C),
                             lambda n: (n, 0, 0, 0, 0)),
                # weights / bias: constant index_map -> fetched once, stay
                # resident in VMEM for the whole grid.
                pl.BlockSpec((9, C, OCp), lambda n: (0, 0, 0)),
                pl.BlockSpec((1, OCp), lambda n: (0, 0)),
            ],
            out_specs=pl.BlockSpec((1, M, OCp), lambda n: (n, 0, 0)),
        ),
        compiler_params=pltpu.CompilerParams(
            dimension_semantics=("parallel",),
            # Explicit budget: comfortably under v7x's 64 MiB/TC; bf16 operands
            # keep the double-buffered input blocks small.
            vmem_limit_bytes=48 * 1024 * 1024,
        ),
    )(x_r, w, b_row)

    # ---- glue: drop OC padding, back to NCHW ----
    out = out[:, :, :OC].reshape(N, OH, OW, OC)
    return jnp.transpose(out, (0, 3, 1, 2))


if __name__ == "__main__":
    # Small shapes consistent with the module: batch=2, in_channels=4,
    # out_channels=8, spatial=16 -> output spatial 8.
    N, C, OC, H, W = 2, 4, 8, 16, 16

    key = jax.random.PRNGKey(0)
    kx, kw, kb = jax.random.split(key, 3)
    x = jax.random.normal(kx, (N, C, H, W), dtype=jnp.float32)
    weight = jax.random.normal(kw, (OC, C, 3, 3), dtype=jnp.float32) * 0.1
    bias = jax.random.normal(kb, (OC,), dtype=jnp.float32) * 0.1

    # Reference: XLA's native strided conv (same semantics as nn.Conv2d).
    ref = jax.lax.conv_general_dilated(
        x, weight, window_strides=(2, 2), padding=((1, 1), (1, 1)),
        dimension_numbers=("NCHW", "OIHW", "NCHW"))
    ref = ref + bias.reshape(1, OC, 1, 1)
    ref = np.asarray(jax.block_until_ready(ref))

    # f32 path: exact-semantics check.
    out_f32 = jax.block_until_ready(
        downsample_forward(x, weight, bias, use_bf16=False))
    assert out_f32.shape == (N, OC, 8, 8), out_f32.shape
    np.testing.assert_allclose(np.asarray(out_f32), ref, rtol=1e-4, atol=1e-4)

    # bf16 MXU path (default): relaxed tolerance for operand quantization.
    out_bf16 = jax.block_until_ready(
        downsample_forward(x, weight, bias, use_bf16=True))
    assert out_bf16.shape == (N, OC, 8, 8), out_bf16.shape
    np.testing.assert_allclose(np.asarray(out_bf16), ref, rtol=3e-2, atol=3e-2)

    print("KERNEL_OK")
</pallas_src>

<mosaic_0001>
module attributes {stable_mosaic.version = 11 : i64} {
  func.func @_downsample_conv_kernel(%arg0: i32, %arg1: memref<1x9x2x9x8xf32, #tpu.memory_space<vmem>>, %arg2: memref<9x4x128xf32, #tpu.memory_space<vmem>>, %arg3: memref<1x128xf32, #tpu.memory_space<vmem>>, %arg4: memref<1x64x128xf32, #tpu.memory_space<vmem>>) attributes {dimension_semantics = [#tpu.dimension_semantics<parallel>], iteration_bounds = array<i64: 2>, scalar_prefetch = 0 : i64, scratch_operands = 0 : i64, tpu.core_type = #tpu.core_type<tc>, window_params = [{transform_indices = @transform_0, window_bounds = array<i64: 1, 9, 2, 9, 8>}, {pipeline_mode = #tpu.pipeline_mode<synchronous>, transform_indices = @transform_1, window_bounds = array<i64: 9, 4, 128>}, {pipeline_mode = #tpu.pipeline_mode<synchronous>, transform_indices = @transform_2, window_bounds = array<i64: 1, 128>}, {transform_indices = @transform_3, window_bounds = array<i64: 1, 64, 128>}]} {
    %cst = arith.constant 0.000000e+00 : f32
    %0 = vector.broadcast %cst : f32 to vector<64x128xf32>
    %c0 = arith.constant 0 : index
    %c0_0 = arith.constant 0 : index
    %c0_1 = arith.constant 0 : index
    %c0_2 = arith.constant 0 : index
    %c0_3 = arith.constant 0 : index
    %1 = vector.load %arg1[%c0, %c0_0, %c0_1, %c0_2, %c0_3] : memref<1x9x2x9x8xf32, #tpu.memory_space<vmem>>, vector<1x8x1x8x4xf32>
    %2 = vector.shape_cast %1 : vector<1x8x1x8x4xf32> to vector<8x8x4xf32>
    %3 = vector.shape_cast %2 : vector<8x8x4xf32> to vector<64x4xf32>
    %c0_4 = arith.constant 0 : index
    %c0_5 = arith.constant 0 : index
    %c0_6 = arith.constant 0 : index
    %4 = vector.load %arg2[%c0_4, %c0_5, %c0_6] : memref<9x4x128xf32, #tpu.memory_space<vmem>>, vector<1x4x128xf32>
    %5 = vector.shape_cast %4 : vector<1x4x128xf32> to vector<4x128xf32>
    %cst_7 = arith.constant dense<0.000000e+00> : vector<64x128xf32>
    %6 = tpu.matmul %3, %5, %cst_7 {dimension_numbers = #tpu.dot_dimension_numbers<[1], [0], [0], [1], [0, 0, 1, 1], [], []>} : vector<64x4xf32>, vector<4x128xf32>, vector<64x128xf32> -> vector<64x128xf32>
    %7 = arith.addf %0, %6 : vector<64x128xf32>
    %c0_8 = arith.constant 0 : index
    %c0_9 = arith.constant 0 : index
    %c0_10 = arith.constant 0 : index
    %c0_11 = arith.constant 0 : index
    %c4 = arith.constant 4 : index
    %8 = vector.load %arg1[%c0_8, %c0_9, %c0_10, %c0_11, %c4] : memref<1x9x2x9x8xf32, #tpu.memory_space<vmem>>, vector<1x8x1x8x4xf32>
    %9 = vector.shape_cast %8 : vector<1x8x1x8x4xf32> to vector<8x8x4xf32>
    %10 = vector.shape_cast %9 : vector<8x8x4xf32> to vector<64x4xf32>
    %c1 = arith.constant 1 : index
    %c0_12 = arith.constant 0 : index
    %c0_13 = arith.constant 0 : index
    %11 = vector.load %arg2[%c1, %c0_12, %c0_13] : memref<9x4x128xf32, #tpu.memory_space<vmem>>, vector<1x4x128xf32>
    %12 = vector.shape_cast %11 : vector<1x4x128xf32> to vector<4x128xf32>
    %cst_14 = arith.constant dense<0.000000e+00> : vector<64x128xf32>
    %13 = tpu.matmul %10, %12, %cst_14 {dimension_numbers = #tpu.dot_dimension_numbers<[1], [0], [0], [1], [0, 0, 1, 1], [], []>} : vector<64x4xf32>, vector<4x128xf32>, vector<64x128xf32> -> vector<64x128xf32>
    %14 = arith.addf %7, %13 : vector<64x128xf32>
    %c0_15 = arith.constant 0 : index
    %c0_16 = arith.constant 0 : index
    %c0_17 = arith.constant 0 : index
    %c1_18 = arith.constant 1 : index
    %c0_19 = arith.constant 0 : index
    %15 = vector.load %arg1[%c0_15, %c0_16, %c0_17, %c1_18, %c0_19] : memref<1x9x2x9x8xf32, #tpu.memory_space<vmem>>, vector<1x8x1x8x4xf32>
    %16 = vector.shape_cast %15 : vector<1x8x1x8x4xf32> to vector<8x8x4xf32>
    %17 = vector.shape_cast %16 : vector<8x8x4xf32> to vector<64x4xf32>
    %c2 = arith.constant 2 : index
    %c0_20 = arith.constant 0 : index
    %c0_21 = arith.constant 0 : index
    %18 = vector.load %arg2[%c2, %c0_20, %c0_21] : memref<9x4x128xf32, #tpu.memory_space<vmem>>, vector<1x4x128xf32>
    %19 = vector.shape_cast %18 : vector<1x4x128xf32> to vector<4x128xf32>
    %cst_22 = arith.constant dense<0.000000e+00> : vector<64x128xf32>
    %20 = tpu.matmul %17, %19, %cst_22 {dimension_numbers = #tpu.dot_dimension_numbers<[1], [0], [0], [1], [0, 0, 1, 1], [], []>} : vector<64x4xf32>, vector<4x128xf32>, vector<64x128xf32> -> vector<64x128xf32>
    %21 = arith.addf %14, %20 : vector<64x128xf32>
    %c0_23 = arith.constant 0 : index
    %c0_24 = arith.constant 0 : index
    %c1_25 = arith.constant 1 : index
    %c0_26 = arith.constant 0 : index
    %c0_27 = arith.constant 0 : index
    %22 = vector.load %arg1[%c0_23, %c0_24, %c1_25, %c0_26, %c0_27] : memref<1x9x2x9x8xf32, #tpu.memory_space<vmem>>, vector<1x8x1x8x4xf32>
    %23 = vector.shape_cast %22 : vector<1x8x1x8x4xf32> to vector<8x8x4xf32>
    %24 = vector.shape_cast %23 : vector<8x8x4xf32> to vector<64x4xf32>
    %c3 = arith.constant 3 : index
    %c0_28 = arith.constant 0 : index
    %c0_29 = arith.constant 0 : index
    %25 = vector.load %arg2[%c3, %c0_28, %c0_29] : memref<9x4x128xf32, #tpu.memory_space<vmem>>, vector<1x4x128xf32>
    %26 = vector.shape_cast %25 : vector<1x4x128xf32> to vector<4x128xf32>
    %cst_30 = arith.constant dense<0.000000e+00> : vector<64x128xf32>
    %27 = tpu.matmul %24, %26, %cst_30 {dimension_numbers = #tpu.dot_dimension_numbers<[1], [0], [0], [1], [0, 0, 1, 1], [], []>} : vector<64x4xf32>, vector<4x128xf32>, vector<64x128xf32> -> vector<64x128xf32>
    %28 = arith.addf %21, %27 : vector<64x128xf32>
    %c0_31 = arith.constant 0 : index
    %c0_32 = arith.constant 0 : index
    %c1_33 = arith.constant 1 : index
    %c0_34 = arith.constant 0 : index
    %c4_35 = arith.constant 4 : index
    %29 = vector.load %arg1[%c0_31, %c0_32, %c1_33, %c0_34, %c4_35] : memref<1x9x2x9x8xf32, #tpu.memory_space<vmem>>, vector<1x8x1x8x4xf32>
    %30 = vector.shape_cast %29 : vector<1x8x1x8x4xf32> to vector<8x8x4xf32>
    %31 = vector.shape_cast %30 : vector<8x8x4xf32> to vector<64x4xf32>
    %c4_36 = arith.constant 4 : index
    %c0_37 = arith.constant 0 : index
    %c0_38 = arith.constant 0 : index
    %32 = vector.load %arg2[%c4_36, %c0_37, %c0_38] : memref<9x4x128xf32, #tpu.memory_space<vmem>>, vector<1x4x128xf32>
    %33 = vector.shape_cast %32 : vector<1x4x128xf32> to vector<4x128xf32>
    %cst_39 = arith.constant dense<0.000000e+00> : vector<64x128xf32>
    %34 = tpu.matmul %31, %33, %cst_39 {dimension_numbers = #tpu.dot_dimension_numbers<[1], [0], [0], [1], [0, 0, 1, 1], [], []>} : vector<64x4xf32>, vector<4x128xf32>, vector<64x128xf32> -> vector<64x128xf32>
    %35 = arith.addf %28, %34 : vector<64x128xf32>
    %c0_40 = arith.constant 0 : index
    %c0_41 = arith.constant 0 : index
    %c1_42 = arith.constant 1 : index
    %c1_43 = arith.constant 1 : index
    %c0_44 = arith.constant 0 : index
    %36 = vector.load %arg1[%c0_40, %c0_41, %c1_42, %c1_43, %c0_44] : memref<1x9x2x9x8xf32, #tpu.memory_space<vmem>>, vector<1x8x1x8x4xf32>
    %37 = vector.shape_cast %36 : vector<1x8x1x8x4xf32> to vector<8x8x4xf32>
    %38 = vector.shape_cast %37 : vector<8x8x4xf32> to vector<64x4xf32>
    %c5 = arith.constant 5 : index
    %c0_45 = arith.constant 0 : index
    %c0_46 = arith.constant 0 : index
    %39 = vector.load %arg2[%c5, %c0_45, %c0_46] : memref<9x4x128xf32, #tpu.memory_space<vmem>>, vector<1x4x128xf32>
    %40 = vector.shape_cast %39 : vector<1x4x128xf32> to vector<4x128xf32>
    %cst_47 = arith.constant dense<0.000000e+00> : vector<64x128xf32>
    %41 = tpu.matmul %38, %40, %cst_47 {dimension_numbers = #tpu.dot_dimension_numbers<[1], [0], [0], [1], [0, 0, 1, 1], [], []>} : vector<64x4xf32>, vector<4x128xf32>, vector<64x128xf32> -> vector<64x128xf32>
    %42 = arith.addf %35, %41 : vector<64x128xf32>
    %c0_48 = arith.constant 0 : index
    %c1_49 = arith.constant 1 : index
    %c0_50 = arith.constant 0 : index
    %c0_51 = arith.constant 0 : index
    %c0_52 = arith.constant 0 : index
    %43 = vector.load %arg1[%c0_48, %c1_49, %c0_50, %c0_51, %c0_52] : memref<1x9x2x9x8xf32, #tpu.memory_space<vmem>>, vector<1x8x1x8x4xf32>
    %44 = vector.shape_cast %43 : vector<1x8x1x8x4xf32> to vector<8x8x4xf32>
    %45 = vector.shape_cast %44 : vector<8x8x4xf32> to vector<64x4xf32>
    %c6 = arith.constant 6 : index
    %c0_53 = arith.constant 0 : index
    %c0_54 = arith.constant 0 : index
    %46 = vector.load %arg2[%c6, %c0_53, %c0_54] : memref<9x4x128xf32, #tpu.memory_space<vmem>>, vector<1x4x128xf32>
    %47 = vector.shape_cast %46 : vector<1x4x128xf32> to vector<4x128xf32>
    %cst_55 = arith.constant dense<0.000000e+00> : vector<64x128xf32>
    %48 = tpu.matmul %45, %47, %cst_55 {dimension_numbers = #tpu.dot_dimension_numbers<[1], [0], [0], [1], [0, 0, 1, 1], [], []>} : vector<64x4xf32>, vector<4x128xf32>, vector<64x128xf32> -> vector<64x128xf32>
    %49 = arith.addf %42, %48 : vector<64x128xf32>
    %c0_56 = arith.constant 0 : index
    %c1_57 = arith.constant 1 : index
    %c0_58 = arith.constant 0 : index
    %c0_59 = arith.constant 0 : index
    %c4_60 = arith.constant 4 : index
    %50 = vector.load %arg1[%c0_56, %c1_57, %c0_58, %c0_59, %c4_60] : memref<1x9x2x9x8xf32, #tpu.memory_space<vmem>>, vector<1x8x1x8x4xf32>
    %51 = vector.shape_cast %50 : vector<1x8x1x8x4xf32> to vector<8x8x4xf32>
    %52 = vector.shape_cast %51 : vector<8x8x4xf32> to vector<64x4xf32>
    %c7 = arith.constant 7 : index
    %c0_61 = arith.constant 0 : index
    %c0_62 = arith.constant 0 : index
    %53 = vector.load %arg2[%c7, %c0_61, %c0_62] : memref<9x4x128xf32, #tpu.memory_space<vmem>>, vector<1x4x128xf32>
    %54 = vector.shape_cast %53 : vector<1x4x128xf32> to vector<4x128xf32>
    %cst_63 = arith.constant dense<0.000000e+00> : vector<64x128xf32>
    %55 = tpu.matmul %52, %54, %cst_63 {dimension_numbers = #tpu.dot_dimension_numbers<[1], [0], [0], [1], [0, 0, 1, 1], [], []>} : vector<64x4xf32>, vector<4x128xf32>, vector<64x128xf32> -> vector<64x128xf32>
    %56 = arith.addf %49, %55 : vector<64x128xf32>
    %c0_64 = arith.constant 0 : index
    %c1_65 = arith.constant 1 : index
    %c0_66 = arith.constant 0 : index
    %c1_67 = arith.constant 1 : index
    %c0_68 = arith.constant 0 : index
    %57 = vector.load %arg1[%c0_64, %c1_65, %c0_66, %c1_67, %c0_68] : memref<1x9x2x9x8xf32, #tpu.memory_space<vmem>>, vector<1x8x1x8x4xf32>
    %58 = vector.shape_cast %57 : vector<1x8x1x8x4xf32> to vector<8x8x4xf32>
    %59 = vector.shape_cast %58 : vector<8x8x4xf32> to vector<64x4xf32>
    %c8 = arith.constant 8 : index
    %c0_69 = arith.constant 0 : index
    %c0_70 = arith.constant 0 : index
    %60 = vector.load %arg2[%c8, %c0_69, %c0_70] : memref<9x4x128xf32, #tpu.memory_space<vmem>>, vector<1x4x128xf32>
    %61 = vector.shape_cast %60 : vector<1x4x128xf32> to vector<4x128xf32>
    %cst_71 = arith.constant dense<0.000000e+00> : vector<64x128xf32>
    %62 = tpu.matmul %59, %61, %cst_71 {dimension_numbers = #tpu.dot_dimension_numbers<[1], [0], [0], [1], [0, 0, 1, 1], [], []>} : vector<64x4xf32>, vector<4x128xf32>, vector<64x128xf32> -> vector<64x128xf32>
    %63 = arith.addf %56, %62 : vector<64x128xf32>
    %c0_72 = arith.constant 0 : index
    %c0_73 = arith.constant 0 : index
    %64 = vector.load %arg3[%c0_72, %c0_73] : memref<1x128xf32, #tpu.memory_space<vmem>>, vector<1x128xf32>
    %65 = vector.broadcast %64 : vector<1x128xf32> to vector<64x128xf32>
    %66 = arith.addf %63, %65 : vector<64x128xf32>
    %c0_74 = arith.constant 0 : index
    %c0_75 = arith.constant 0 : index
    %c0_76 = arith.constant 0 : index
    %67 = vector.load %arg4[%c0_74, %c0_75, %c0_76] : memref<1x64x128xf32, #tpu.memory_space<vmem>>, vector<1x64x128xf32>
    %68 = vector.shape_cast %67 : vector<1x64x128xf32> to vector<64x128xf32>
    %69 = vector.shape_cast %66 : vector<64x128xf32> to vector<1x64x128xf32>
    tpu.vector_store %arg4[%c0_74, %c0_75, %c0_76], %69 {strides = array<i32>} : memref<1x64x128xf32, #tpu.memory_space<vmem>>, vector<1x64x128xf32>,
    return
  }
  func.func @transform_0(%arg0: i32) -> (i32, i32, i32, i32, i32) {
    %c0_i32 = arith.constant 0 : i32
    %c0_i32_0 = arith.constant 0 : i32
    %c0_i32_1 = arith.constant 0 : i32
    %c0_i32_2 = arith.constant 0 : i32
    %c0_i32_3 = arith.constant 0 : i32
    return %arg0, %c0_i32, %c0_i32_0, %c0_i32_1, %c0_i32_2 : i32, i32, i32, i32, i32
  }
  func.func @transform_1(%arg0: i32) -> (i32, i32, i32) {
    %c0_i32 = arith.constant 0 : i32
    %c0_i32_0 = arith.constant 0 : i32
    %c0_i32_1 = arith.constant 0 : i32
    %c0_i32_2 = arith.constant 0 : i32
    return %c0_i32, %c0_i32_0, %c0_i32_1 : i32, i32, i32
  }
  func.func @transform_2(%arg0: i32) -> (i32, i32) {
    %c0_i32 = arith.constant 0 : i32
    %c0_i32_0 = arith.constant 0 : i32
    %c0_i32_1 = arith.constant 0 : i32
    return %c0_i32, %c0_i32_0 : i32, i32
  }
  func.func @transform_3(%arg0: i32) -> (i32, i32, i32) {
    %c0_i32 = arith.constant 0 : i32
    %c0_i32_0 = arith.constant 0 : i32
    %c0_i32_1 = arith.constant 0 : i32
    return %arg0, %c0_i32, %c0_i32_0 : i32, i32, i32
  }
}

</mosaic_0001>

<llo_original>
// kernel: downsample_forward.1
$region0: #{downsample_forward.1}
  #allocation0 [shape = 'u32[]', space=smem, size = 0x4, offset = 0x4, fixed_abs, tag = 'smem constant byte address 0x4 - core index']
  #allocation1 [shape = 'u32[144,128]{1,0:T(1,128)}', space=vmem, size = 0x12000, scoped, tag = 'internal scratch']
  %s0 = inlined_call_operand.vmem [shape: f32[2,9,2,9,8], index: 0, kind: input, shape index: {}]
  %s1 = inlined_call_operand.vmem [shape: f32[9,4,128], index: 1, kind: input, shape index: {}]
  %s2 = inlined_call_operand.vmem [shape: f32[1,128], index: 2, kind: input, shape index: {}]
  %s3 = inlined_call_operand.vmem [shape: f32[2,64,128], index: 3, kind: output, shape index: {}]
  %s4 = sld [smem:[#allocation0]]
  $region45: #{downsample_forward.1} parent=0
    _
  %s6 = ssub.s32 1, %s4
  %s7 = scalar_select 0, %s6, %s4
  loop: start=0, step=1, limit=4
  $region2: #{downsample_forward.1} parent=0 // loop_pre_header
    _
  $region3: #{downsample_forward.1} parent=0 // loop_header
    %s9 = sphi 0, %s13
    %p10 = scmp.ge.s32.totalorder %s9, 4
    %s19 = sphi 0, %s21
    %s22 = sphi 0, %s19
    %s23 = sphi 0, %s22
    %s39 = sphi 0, %s23
    %s43 = sphi 0, %s43
    %s45 = sphi 0, %s43
    %s46 = sphi 0, %s45
    %s60 = sphi 0, %s46
    %s64 = sphi 0, %s64
    %s66 = sphi 0, %s64
    %s67 = sphi 0, %s66
    %s81 = sphi 0, %s67
    %s87 = sphi 0, %s89
    %s90 = sphi 0, %s87
    %s91 = sphi 0, %s90
    %s107 = sphi 0, %s91
  $region4: #{downsample_forward.1} parent=0 // loop_header_branch
    %12 = sbr.rel (%p10) target = $region8
  $region5: #{downsample_forward.1} parent=0 // loop_body
    %s14 = ssub.s32 %s9, 1
    %s15 = ssub.s32 %s9, 2
    %s16 = sadd.s32 %s9, 1
    %s17 = ssub.s32 %s9, %s16
    %p18 = scmp.eq.s32.totalorder %s17, 0
    %s20 = sadd.s32 %s19, 1
    %s21 = scalar_select %p18, %s19, %s20
    %p24 = pneg %p18
    %p25 = scmp.eq.s32.totalorder %s9, 1
    %p26 = por %p24, %p25
    %p27 = scmp.ne.s32.totalorder %s19, %s22
    %p28 = scmp.eq.s32.totalorder %s9, 0
    %p29 = por %p27, %p28
    %p30 = scmp.ne.s32.totalorder %s19, %s22
    %p31 = scmp.eq.s32.totalorder %s14, 1
    %p32 = por %p30, %p31
    %p33 = scmp.ne.s32.totalorder %s22, %s23
    %p34 = scmp.eq.s32.totalorder %s14, 0
    %p35 = por %p33, %p34
    %p36 = scmp.ne.s32.totalorder %s22, %s23
    %p37 = scmp.eq.s32.totalorder %s15, 1
    %p38 = por %p36, %p37
    %p40 = scmp.ne.s32.totalorder %s23, %s39
    %p41 = scmp.eq.s32.totalorder %s15, 0
    %p42 = por %p40, %p41
    %s44 = sadd.s32 %s43, 1
    %p47 = scmp.eq.s32.totalorder %s9, 1
    %p48 = scmp.ne.s32.totalorder %s43, %s45
    %p49 = scmp.eq.s32.totalorder %s9, 0
    %p50 = por %p48, %p49
    %p51 = scmp.ne.s32.totalorder %s43, %s45
    %p52 = scmp.eq.s32.totalorder %s14, 1
    %p53 = por %p51, %p52
    %p54 = scmp.ne.s32.totalorder %s45, %s46
    %p55 = scmp.eq.s32.totalorder %s14, 0
    %p56 = por %p54, %p55
    %p57 = scmp.ne.s32.totalorder %s45, %s46
    %p58 = scmp.eq.s32.totalorder %s15, 1
    %p59 = por %p57, %p58
    %p61 = scmp.ne.s32.totalorder %s46, %s60
    %p62 = scmp.eq.s32.totalorder %s15, 0
    %p63 = por %p61, %p62
    %s65 = sadd.s32 %s64, 1
    %p68 = scmp.eq.s32.totalorder %s9, 1
    %p69 = scmp.ne.s32.totalorder %s64, %s66
    %p70 = scmp.eq.s32.totalorder %s9, 0
    %p71 = por %p69, %p70
    %p72 = scmp.ne.s32.totalorder %s64, %s66
    %p73 = scmp.eq.s32.totalorder %s14, 1
    %p74 = por %p72, %p73
    %p75 = scmp.ne.s32.totalorder %s66, %s67
    %p76 = scmp.eq.s32.totalorder %s14, 0
    %p77 = por %p75, %p76
    %p78 = scmp.ne.s32.totalorder %s66, %s67
    %p79 = scmp.eq.s32.totalorder %s15, 1
    %p80 = por %p78, %p79
    %p82 = scmp.ne.s32.totalorder %s67, %s81
    %p83 = scmp.eq.s32.totalorder %s15, 0
    %p84 = por %p82, %p83
    %s85 = ssub.s32 %s9, %s16
    %p86 = scmp.eq.s32.totalorder %s85, 0
    %s88 = sadd.s32 %s87, 1
    %s89 = scalar_select %p86, %s87, %s88
    %p92 = pneg %p86
    %p93 = scmp.eq.s32.totalorder %s9, 1
    %p94 = por %p92, %p93
    %p95 = scmp.ne.s32.totalorder %s87, %s90
    %p96 = scmp.eq.s32.totalorder %s9, 0
    %p97 = por %p95, %p96
    %p98 = scmp.ne.s32.totalorder %s87, %s90
    %p99 = scmp.eq.s32.totalorder %s14, 1
    %p100 = por %p98, %p99
    %p101 = scmp.ne.s32.totalorder %s90, %s91
    %p102 = scmp.eq.s32.totalorder %s14, 0
    %p103 = por %p101, %p102
    %p104 = scmp.ne.s32.totalorder %s90, %s91
    %p105 = scmp.eq.s32.totalorder %s15, 1
    %p106 = por %p104, %p105
    %p108 = scmp.ne.s32.totalorder %s91, %s107
    %p109 = scmp.eq.s32.totalorder %s15, 0
    %p110 = por %p108, %p109
    %p111 = scmp.le.s32.totalorder 1, %s9
    %p112 = scmp.lt.s32.totalorder %s9, 3
    %p113 = pnand %p111, %p112
    %p114 = pneg %p113
    // Predicated region
    $region9: #{downsample_forward.1} parent=5 // pred_check
      _
    $region10: #{downsample_forward.1} parent=5 // pred_check_branch
      %116 = sbr.rel (%p113) target = $region12
    $region11: #{downsample_forward.1} parent=5 // pred_region
      %s117 = ssub.s32 %s9, 1
      // Predicated region
      $region13: #{downsample_forward.1} parent=11 // pred_check
        %p118 = pneg %p56
      $region14: #{downsample_forward.1} parent=11 // pred_check_branch
        %120 = sbr.rel (%p118) target = $region16
      $region15: #{downsample_forward.1} parent=11 // pred_region
        _
      $region16: #{downsample_forward.1} parent=11 // pred_fallthru
        _
      // Predicated region
      $region17: #{downsample_forward.1} parent=11 // pred_check
        %p121 = pneg %p77
      $region18: #{downsample_forward.1} parent=11 // pred_check_branch
        %123 = sbr.rel (%p121) target = $region20
      $region19: #{downsample_forward.1} parent=11 // pred_region
        _
      $region20: #{downsample_forward.1} parent=11 // pred_fallthru
        _
    $region12: #{downsample_forward.1} parent=5 // pred_fallthru
      _
    %p124 = scmp.lt.s32.totalorder %s9, 2
    // Predicated region
    $region21: #{downsample_forward.1} parent=5 // pred_check
      %p125 = pneg %p124
    $region22: #{downsample_forward.1} parent=5 // pred_check_branch
      %127 = sbr.rel (%p125) target = $region24
    $region23: #{downsample_forward.1} parent=5 // pred_region
      // Predicated region
      $region25: #{downsample_forward.1} parent=23 // pred_check
        %p128 = pneg %p29
      $region26: #{downsample_forward.1} parent=23 // pred_check_branch
        %130 = sbr.rel (%p128) target = $region28
      $region27: #{downsample_forward.1} parent=23 // pred_region
        %p131 = scmp.lt.s32.totalorder %s9, 1
        %s132 = scalar_select %p131, %s9, 1
        %s133 = smul.addr %s132, 36
        %s134 = smul.addr %s133, 8
        %s135 = scalar_lea.vmem %s0, %s134
      $region28: #{downsample_forward.1} parent=23 // pred_fallthru
        _
    $region24: #{downsample_forward.1} parent=5 // pred_fallthru
      _
    %p136 = scmp.le.s32.totalorder 1, %s9
    %p137 = scmp.lt.s32.totalorder %s9, 3
    %p138 = pnand %p136, %p137
    %p139 = pneg %p138
    // Predicated region
    $region29: #{downsample_forward.1} parent=5 // pred_check
      _
    $region30: #{downsample_forward.1} parent=5 // pred_check_branch
      %141 = sbr.rel (%p138) target = $region32
    $region31: #{downsample_forward.1} parent=5 // pred_region
      %s142 = ssub.s32 %s9, 1
      %p143 = scmp.lt.s32.totalorder %s14, 1
      %s144 = scalar_select %p143, %s14, 1
      %s145 = smul.addr %s144, 36
      %s146 = smul.addr %s145, 8
      %s147 = scalar_lea.vmem %s0, %s146
      %p148 = pneg %p35
      %p149 = pneg %p32
      %p150 = pneg %p56
      %p151 = pneg %p53
      %p152 = pneg %p77
      %p153 = pneg %p74
      %p154 = pneg %p103
      %p155 = pneg %p100
      %p156 = scmp.lt.s32.totalorder %s14, 1
      %s157 = scalar_select %p156, %s14, 1
      %s158 = smul.addr %s157, 8
      %s159 = smul.addr %s158, 8
      %s160 = scalar_lea.vmem %s3, %s159
      %p161 = scmp.lt.s32.totalorder %s14, 1
      %s162 = scalar_select %p161, %s14, 1
      %s163 = smul.addr %s162, 36
      %s164 = smul.addr %s163, 8
      %s165 = scalar_lea.vmem %s0, %s164
      %p166 = scmp.lt.s32.totalorder %s14, 1
      %s167 = scalar_select %p166, %s14, 1
      %s168 = smul.addr %s167, 8
      %s169 = smul.addr %s168, 8
      %s170 = scalar_lea.vmem %s3, %s169
      %v171 = vld [vmem:[%s165] sm:$0xff]
      %v172 = vld [vmem:[%s165 + $0x20] sm:$0xff]
      %v173 = vld [vmem:[%s165 + $0x40] sm:$0xff]
      %v174 = vld [vmem:[%s165 + $0x60] sm:$0xff]
      %v175 = vld [vmem:[%s165 + $0x80] sm:$0xff]
      %v176 = vld [vmem:[%s165 + $0xa0] sm:$0xff]
      %v177 = vld [vmem:[%s165 + $0xc0] sm:$0xff]
      %v178 = vld [vmem:[%s165 + $0xe0] sm:$0xff]
      %v179 = vld [vmem:[%s1] sm:$0xf]
      %s180 = scalar_lea.vmem %s1, 4
      %v181 = vld [vmem:[%s180] sm:$0xf]
      %190 = vrot.lane.b32.xlu0 %v171, 124
      %v191 = vpop.permute.xlu0 %190
      %192 = vrot.lane.b32.xlu0 %v172, 124
      %v193 = vpop.permute.xlu0 %192
      %194 = vrot.lane.b32.xlu0 %v173, 124
      %v195 = vpop.permute.xlu0 %194
      %196 = vrot.lane.b32.xlu0 %v174, 124
      %v197 = vpop.permute.xlu0 %196
      %198 = vrot.lane.b32.xlu0 %v175, 124
      %v199 = vpop.permute.xlu0 %198
      %200 = vrot.lane.b32.xlu0 %v176, 124
      %v201 = vpop.permute.xlu0 %200
      %202 = vrot.lane.b32.xlu0 %v177, 124
      %v203 = vpop.permute.xlu0 %202
      %204 = vrot.lane.b32.xlu0 %v178, 124
      %v205 = vpop.permute.xlu0 %204
      %vm206 = vcmask 31744
      %v207 = vsel %vm206, %v191, 0
      %v209 = vsel %vm206, %v193, 0
      %v211 = vsel %vm206, %v195, 0
      %v213 = vsel %vm206, %v197, 0
      %v215 = vsel %vm206, %v199, 0
      %v217 = vsel %vm206, %v201, 0
      %v219 = vsel %vm206, %v203, 0
      %v221 = vsel %vm206, %v205, 0
      %vm223 = vcmask 1043456
      %v225 = vsel %vm223, %v181, 0
      %227 = vmatprep.subr.mxu0 0.0
      %228 = vmatpush1.msra.mxu0 0.0
      %229 = vmatprep.subr.mxu0 0.0
      %230 = vmatpush1.msra.mxu0 0.0
      %231 = vmatprep.subr.mxu0 0.0
      %232 = vmatpush1.msra.mxu0 0.0
      %233 = vmatprep.subr.mxu0 0.0
      %234 = vmatpush1.msra.mxu0 0.0
      %235 = vmatprep.subr.mxu0 0.0
      %236 = vmatpush1.msra.mxu0 0.0
      %237 = vmatprep.subr.mxu0 0.0
      %238 = vmatpush1.msra.mxu0 0.0
      %239 = vmatprep.subr.mxu0 0.0
      %240 = vmatpush1.msra.mxu0 0.0
      %241 = vmatprep.subr.mxu0 0.0
      %242 = vmatpush1.msra.mxu0 0.0
      %243 = vmatprep.subr.mxu0 0.0
      %244 = vmatpush1.msra.mxu0 0.0
      %245 = vmatprep.subr.mxu0 0.0
      %246 = vmatpush1.msra.mxu0 0.0
      %247 = vmatprep.subr.mxu0 0.0
      %248 = vmatpush1.msra.mxu0 0.0
      %249 = vmatprep.subr.mxu0 0.0
      %250 = vmatpush1.msra.mxu0 0.0
      %251 = vmatprep.subr.mxu0 0.0
      %252 = vmatpush1.msra.mxu0 0.0
      %253 = vmatprep.subr.mxu0 0.0
      %254 = vmatpush1.msra.mxu0 0.0
      %255 = vmatprep.subr.mxu0 0.0
      %256 = vmatpush1.msra.mxu0 0.0
      %257 = vmatprep.subr.mxu0 0.0
      %258 = vmatpush1.msra.mxu0 %v225
      %259 = vmatprep.subr.mxu0 0.0
      %260 = vmatpush2.msra.mxu0 0.0
      %261 = vmatprep.subr.mxu0 0.0
      %262 = vmatpush2.msra.mxu0 0.0
      %263 = vmatprep.subr.mxu0 0.0
      %264 = vmatpush2.msra.mxu0 0.0
      %265 = vmatprep.subr.mxu0 0.0
      %266 = vmatpush2.msra.mxu0 0.0
      %267 = vmatprep.subr.mxu0 0.0
      %268 = vmatpush2.msra.mxu0 0.0
      %269 = vmatprep.subr.mxu0 0.0
      %270 = vmatpush2.msra.mxu0 0.0
      %271 = vmatprep.subr.mxu0 0.0
      %272 = vmatpush2.msra.mxu0 0.0
      %273 = vmatprep.subr.mxu0 0.0
      %274 = vmatpush2.msra.mxu0 0.0
      %275 = vmatprep.subr.mxu0 0.0
      %276 = vmatpush2.msra.mxu0 0.0
      %277 = vmatprep.subr.mxu0 0.0
      %278 = vmatpush2.msra.mxu0 0.0
      %279 = vmatprep.subr.mxu0 0.0
      %280 = vmatpush2.msra.mxu0 0.0
      %281 = vmatprep.subr.mxu0 0.0
      %282 = vmatpush2.msra.mxu0 0.0
      %283 = vmatprep.subr.mxu0 0.0
      %284 = vmatpush2.msra.mxu0 0.0
      %285 = vmatprep.subr.mxu0 0.0
      %286 = vmatpush2.msra.mxu0 0.0
      %287 = vmatprep.subr.mxu0 0.0
      %288 = vmatpush2.msra.mxu0 0.0
      %289 = vmatprep.subr.mxu0 0.0
      %290 = vmatpush2.msra.mxu0 0.0
      %291 = vmatprep.mubr.f32.mxu0 0.0
      %292 = vmatmul.mubr.f32.gmra.mxu0 %v207
      %v293 = vpop.f32.mrf.mxu0
      %v294 = vadd.f32 0.0, %v293
      %v295 = vpop.f32.mrf.mxu0
      %296 = vmatprep.mubr.f32.mxu0 0.0
      %297 = vmatmul.mubr.f32.gmra.mxu0 %v209
      %v298 = vpop.f32.mrf.mxu0
      %v299 = vadd.f32 0.0, %v298
      %v300 = vpop.f32.mrf.mxu0
      %301 = vmatprep.mubr.f32.mxu0 0.0
      %302 = vmatmul.mubr.f32.gmra.mxu0 %v211
      %v303 = vpop.f32.mrf.mxu0
      %v304 = vadd.f32 0.0, %v303
      %v305 = vpop.f32.mrf.mxu0
      %306 = vmatprep.mubr.f32.mxu0 0.0
      %307 = vmatmul.mubr.f32.gmra.mxu0 %v213
      %v308 = vpop.f32.mrf.mxu0
      %v309 = vadd.f32 0.0, %v308
      %v310 = vpop.f32.mrf.mxu0
      %311 = vmatprep.mubr.f32.mxu0 0.0
      %312 = vmatmul.mubr.f32.gmra.mxu0 %v215
      %v313 = vpop.f32.mrf.mxu0
      %v314 = vadd.f32 0.0, %v313
      %v315 = vpop.f32.mrf.mxu0
      %316 = vmatprep.mubr.f32.mxu0 0.0
      %317 = vmatmul.mubr.f32.gmra.mxu0 %v217
      %v318 = vpop.f32.mrf.mxu0
      %v319 = vadd.f32 0.0, %v318
      %v320 = vpop.f32.mrf.mxu0
      %321 = vmatprep.mubr.f32.mxu0 0.0
      %322 = vmatmul.mubr.f32.gmra.mxu0 %v219
      %v323 = vpop.f32.mrf.mxu0
      %v324 = vadd.f32 0.0, %v323
      %v325 = vpop.f32.mrf.mxu0
      %326 = vmatprep.mubr.f32.mxu0 0.0
      %327 = vmatmul.mubr.f32.gmra.mxu0 %v221
      %v328 = vpop.f32.mrf.mxu0
      %v329 = vadd.f32 0.0, %v328
      %v330 = vpop.f32.mrf.mxu0
      %331 = vdwg.mxu0
      %v332 = vsel %vm206, %v171, 0
      %v334 = vsel %vm206, %v172, 0
      %v336 = vsel %vm206, %v173, 0
      %v338 = vsel %vm206, %v174, 0
      %v340 = vsel %vm206, %v175, 0
      %v342 = vsel %vm206, %v176, 0
      %v344 = vsel %vm206, %v177, 0
      %v346 = vsel %vm206, %v178, 0
      %v349 = vsel %vm223, %v179, 0
      %351 = vmatprep.subr.mxu0 0.0
      %352 = vmatpush1.msra.mxu0 0.0
      %353 = vmatprep.subr.mxu0 0.0
      %354 = vmatpush1.msra.mxu0 0.0
      %355 = vmatprep.subr.mxu0 0.0
      %356 = vmatpush1.msra.mxu0 0.0
      %357 = vmatprep.subr.mxu0 0.0
      %358 = vmatpush1.msra.mxu0 0.0
      %359 = vmatprep.subr.mxu0 0.0
      %360 = vmatpush1.msra.mxu0 0.0
      %361 = vmatprep.subr.mxu0 0.0
      %362 = vmatpush1.msra.mxu0 0.0
      %363 = vmatprep.subr.mxu0 0.0
      %364 = vmatpush1.msra.mxu0 0.0
      %365 = vmatprep.subr.mxu0 0.0
      %366 = vmatpush1.msra.mxu0 0.0
      %367 = vmatprep.subr.mxu0 0.0
      %368 = vmatpush1.msra.mxu0 0.0
      %369 = vmatprep.subr.mxu0 0.0
      %370 = vmatpush1.msra.mxu0 0.0
      %371 = vmatprep.subr.mxu0 0.0
      %372 = vmatpush1.msra.mxu0 0.0
      %373 = vmatprep.subr.mxu0 0.0
      %374 = vmatpush1.msra.mxu0 0.0
      %375 = vmatprep.subr.mxu0 0.0
      %376 = vmatpush1.msra.mxu0 0.0
      %377 = vmatprep.subr.mxu0 0.0
      %378 = vmatpush1.msra.mxu0 0.0
      %379 = vmatprep.subr.mxu0 0.0
      %380 = vmatpush1.msra.mxu0 0.0
      %381 = vmatprep.subr.mxu0 0.0
      %382 = vmatpush1.msra.mxu0 %v349
      %383 = vmatprep.subr.mxu0 0.0
      %384 = vmatpush2.msra.mxu0 0.0
      %385 = vmatprep.subr.mxu0 0.0
      %386 = vmatpush2.msra.mxu0 0.0
      %387 = vmatprep.subr.mxu0 0.0
      %388 = vmatpush2.msra.mxu0 0.0
      %389 = vmatprep.subr.mxu0 0.0
      %390 = vmatpush2.msra.mxu0 0.0
      %391 = vmatprep.subr.mxu0 0.0
      %392 = vmatpush2.msra.mxu0 0.0
      %393 = vmatprep.subr.mxu0 0.0
      %394 = vmatpush2.msra.mxu0 0.0
      %395 = vmatprep.subr.mxu0 0.0
      %396 = vmatpush2.msra.mxu0 0.0
      %397 = vmatprep.subr.mxu0 0.0
      %398 = vmatpush2.msra.mxu0 0.0
      %399 = vmatprep.subr.mxu0 0.0
      %400 = vmatpush2.msra.mxu0 0.0
      %401 = vmatprep.subr.mxu0 0.0
      %402 = vmatpush2.msra.mxu0 0.0
      %403 = vmatprep.subr.mxu0 0.0
      %404 = vmatpush2.msra.mxu0 0.0
      %405 = vmatprep.subr.mxu0 0.0
      %406 = vmatpush2.msra.mxu0 0.0
      %407 = vmatprep.subr.mxu0 0.0
      %408 = vmatpush2.msra.mxu0 0.0
      %409 = vmatprep.subr.mxu0 0.0
      %410 = vmatpush2.msra.mxu0 0.0
      %411 = vmatprep.subr.mxu0 0.0
      %412 = vmatpush2.msra.mxu0 0.0
      %413 = vmatprep.subr.mxu0 0.0
      %414 = vmatpush2.msra.mxu0 0.0
      %415 = vmatprep.mubr.f32.mxu0 0.0
      %416 = vmatmul.mubr.f32.gmra.mxu0 %v332
      %v417 = vpop.f32.mrf.mxu0
      %v418 = vadd.f32 %v294, %v417
      %v419 = vpop.f32.mrf.mxu0
      %420 = vmatprep.mubr.f32.mxu0 0.0
      %421 = vmatmul.mubr.f32.gmra.mxu0 %v334
      %v422 = vpop.f32.mrf.mxu0
      %v423 = vadd.f32 %v299, %v422
      %v424 = vpop.f32.mrf.mxu0
      %425 = vmatprep.mubr.f32.mxu0 0.0
      %426 = vmatmul.mubr.f32.gmra.mxu0 %v336
      %v427 = vpop.f32.mrf.mxu0
      %v428 = vadd.f32 %v304, %v427
      %v429 = vpop.f32.mrf.mxu0
      %430 = vmatprep.mubr.f32.mxu0 0.0
      %431 = vmatmul.mubr.f32.gmra.mxu0 %v338
      %v432 = vpop.f32.mrf.mxu0
      %v433 = vadd.f32 %v309, %v432
      %v434 = vpop.f32.mrf.mxu0
      %435 = vmatprep.mubr.f32.mxu0 0.0
      %436 = vmatmul.mubr.f32.gmra.mxu0 %v340
      %v437 = vpop.f32.mrf.mxu0
      %v438 = vadd.f32 %v314, %v437
      %v439 = vpop.f32.mrf.mxu0
      %440 = vmatprep.mubr.f32.mxu0 0.0
      %441 = vmatmul.mubr.f32.gmra.mxu0 %v342
      %v442 = vpop.f32.mrf.mxu0
      %v443 = vadd.f32 %v319, %v442
      %v444 = vpop.f32.mrf.mxu0
      %445 = vmatprep.mubr.f32.mxu0 0.0
      %446 = vmatmul.mubr.f32.gmra.mxu0 %v344
      %v447 = vpop.f32.mrf.mxu0
      %v448 = vadd.f32 %v324, %v447
      %v449 = vpop.f32.mrf.mxu0
      %450 = vmatprep.mubr.f32.mxu0 0.0
      %451 = vmatmul.mubr.f32.gmra.mxu0 %v346
      %v452 = vpop.f32.mrf.mxu0
      %v453 = vadd.f32 %v329, %v452
      %v454 = vpop.f32.mrf.mxu0
      %455 = vdwg.mxu0
      %v456 = vld [vmem:[%s165 + $0x1] sm:$0xff]
      %v457 = vld [vmem:[%s165 + $0x21] sm:$0xff]
      %v458 = vld [vmem:[%s165 + $0x41] sm:$0xff]
      %v459 = vld [vmem:[%s165 + $0x61] sm:$0xff]
      %v460 = vld [vmem:[%s165 + $0x81] sm:$0xff]
      %v461 = vld [vmem:[%s165 + $0xa1] sm:$0xff]
      %v462 = vld [vmem:[%s165 + $0xc1] sm:$0xff]
      %v463 = vld [vmem:[%s165 + $0xe1] sm:$0xff]
      %s464 = scalar_lea.vmem %s1, 8
      %v465 = vld [vmem:[%s464] sm:$0xf]
      %v467 = vsel %vm206, %v456, 0
      %v470 = vsel %vm206, %v457, 0
      %v473 = vsel %vm206, %v458, 0
      %v476 = vsel %vm206, %v459, 0
      %v479 = vsel %vm206, %v460, 0
      %v482 = vsel %vm206, %v461, 0
      %v485 = vsel %vm206, %v462, 0
      %v488 = vsel %vm206, %v463, 0
      %v491 = vsel %vm223, %v465, 0
      %493 = vmatprep.subr.mxu0 0.0
      %494 = vmatpush1.msra.mxu0 0.0
      %495 = vmatprep.subr.mxu0 0.0
      %496 = vmatpush1.msra.mxu0 0.0
      %497 = vmatprep.subr.mxu0 0.0
      %498 = vmatpush1.msra.mxu0 0.0
      %499 = vmatprep.subr.mxu0 0.0
      %500 = vmatpush1.msra.mxu0 0.0
      %501 = vmatprep.subr.mxu0 0.0
      %502 = vmatpush1.msra.mxu0 0.0
      %503 = vmatprep.subr.mxu0 0.0
      %504 = vmatpush1.msra.mxu0 0.0
      %505 = vmatprep.subr.mxu0 0.0
      %506 = vmatpush1.msra.mxu0 0.0
      %507 = vmatprep.subr.mxu0 0.0
      %508 = vmatpush1.msra.mxu0 0.0
      %509 = vmatprep.subr.mxu0 0.0
      %510 = vmatpush1.msra.mxu0 0.0
      %511 = vmatprep.subr.mxu0 0.0
      %512 = vmatpush1.msra.mxu0 0.0
      %513 = vmatprep.subr.mxu0 0.0
      %514 = vmatpush1.msra.mxu0 0.0
      %515 = vmatprep.subr.mxu0 0.0
      %516 = vmatpush1.msra.mxu0 0.0
      %517 = vmatprep.subr.mxu0 0.0
      %518 = vmatpush1.msra.mxu0 0.0
      %519 = vmatprep.subr.mxu0 0.0
      %520 = vmatpush1.msra.mxu0 0.0
      %521 = vmatprep.subr.mxu0 0.0
      %522 = vmatpush1.msra.mxu0 0.0
      %523 = vmatprep.subr.mxu0 0.0
      %524 = vmatpush1.msra.mxu0 %v491
      %525 = vmatprep.subr.mxu0 0.0
      %526 = vmatpush2.msra.mxu0 0.0
      %527 = vmatprep.subr.mxu0 0.0
      %528 = vmatpush2.msra.mxu0 0.0
      %529 = vmatprep.subr.mxu0 0.0
      %530 = vmatpush2.msra.mxu0 0.0
      %531 = vmatprep.subr.mxu0 0.0
      %532 = vmatpush2.msra.mxu0 0.0
      %533 = vmatprep.subr.mxu0 0.0
      %534 = vmatpush2.msra.mxu0 0.0
      %535 = vmatprep.subr.mxu0 0.0
      %536 = vmatpush2.msra.mxu0 0.0
      %537 = vmatprep.subr.mxu0 0.0
      %538 = vmatpush2.msra.mxu0 0.0
      %539 = vmatprep.subr.mxu0 0.0
      %540 = vmatpush2.msra.mxu0 0.0
      %541 = vmatprep.subr.mxu0 0.0
      %542 = vmatpush2.msra.mxu0 0.0
      %543 = vmatprep.subr.mxu0 0.0
      %544 = vmatpush2.msra.mxu0 0.0
      %545 = vmatprep.subr.mxu0 0.0
      %546 = vmatpush2.msra.mxu0 0.0
      %547 = vmatprep.subr.mxu0 0.0
      %548 = vmatpush2.msra.mxu0 0.0
      %549 = vmatprep.subr.mxu0 0.0
      %550 = vmatpush2.msra.mxu0 0.0
      %551 = vmatprep.subr.mxu0 0.0
      %552 = vmatpush2.msra.mxu0 0.0
      %553 = vmatprep.subr.mxu0 0.0
      %554 = vmatpush2.msra.mxu0 0.0
      %555 = vmatprep.subr.mxu0 0.0
      %556 = vmatpush2.msra.mxu0 0.0
      %557 = vmatprep.mubr.f32.mxu0 0.0
      %558 = vmatmul.mubr.f32.gmra.mxu0 %v467
      %v559 = vpop.f32.mrf.mxu0
      %v560 = vadd.f32 0.0, %v559
      %v561 = vpop.f32.mrf.mxu0
      %562 = vmatprep.mubr.f32.mxu0 0.0
      %563 = vmatmul.mubr.f32.gmra.mxu0 %v470
      %v564 = vpop.f32.mrf.mxu0
      %v565 = vadd.f32 0.0, %v564
      %v566 = vpop.f32.mrf.mxu0
      %567 = vmatprep.mubr.f32.mxu0 0.0
      %568 = vmatmul.mubr.f32.gmra.mxu0 %v473
      %v569 = vpop.f32.mrf.mxu0
      %v570 = vadd.f32 0.0, %v569
      %v571 = vpop.f32.mrf.mxu0
      %572 = vmatprep.mubr.f32.mxu0 0.0
      %573 = vmatmul.mubr.f32.gmra.mxu0 %v476
      %v574 = vpop.f32.mrf.mxu0
      %v575 = vadd.f32 0.0, %v574
      %v576 = vpop.f32.mrf.mxu0
      %577 = vmatprep.mubr.f32.mxu0 0.0
      %578 = vmatmul.mubr.f32.gmra.mxu0 %v479
      %v579 = vpop.f32.mrf.mxu0
      %v580 = vadd.f32 0.0, %v579
      %v581 = vpop.f32.mrf.mxu0
      %582 = vmatprep.mubr.f32.mxu0 0.0
      %583 = vmatmul.mubr.f32.gmra.mxu0 %v482
      %v584 = vpop.f32.mrf.mxu0
      %v585 = vadd.f32 0.0, %v584
      %v586 = vpop.f32.mrf.mxu0
      %587 = vmatprep.mubr.f32.mxu0 0.0
      %588 = vmatmul.mubr.f32.gmra.mxu0 %v485
      %v589 = vpop.f32.mrf.mxu0
      %v590 = vadd.f32 0.0, %v589
      %v591 = vpop.f32.mrf.mxu0
      %592 = vmatprep.mubr.f32.mxu0 0.0
      %593 = vmatmul.mubr.f32.gmra.mxu0 %v488
      %v594 = vpop.f32.mrf.mxu0
      %v595 = vadd.f32 0.0, %v594
      %v596 = vpop.f32.mrf.mxu0
      %597 = vdwg.mxu0
      %v598 = vadd.f32 %v418, %v560
      %v599 = vadd.f32 %v423, %v565
      %v600 = vadd.f32 %v428, %v570
      %v601 = vadd.f32 %v433, %v575
      %v602 = vadd.f32 %v438, %v580
      %v603 = vadd.f32 %v443, %v585
      %v604 = vadd.f32 %v448, %v590
      %v605 = vadd.f32 %v453, %v595
      %s606 = scalar_lea.vmem %s165, 16
      %v607 = vld [vmem:[%s606] sm:$0xff]
      %v608 = vld [vmem:[%s606 + $0x20] sm:$0xff]
      %v609 = vld [vmem:[%s606 + $0x40] sm:$0xff]
      %v610 = vld [vmem:[%s606 + $0x60] sm:$0xff]
      %v611 = vld [vmem:[%s606 + $0x80] sm:$0xff]
      %v612 = vld [vmem:[%s606 + $0xa0] sm:$0xff]
      %v613 = vld [vmem:[%s606 + $0xc0] sm:$0xff]
      %v614 = vld [vmem:[%s606 + $0xe0] sm:$0xff]
      %s615 = scalar_lea.vmem %s1, 12
      %v616 = vld [vmem:[%s615] sm:$0xf]
      %v618 = vsel %vm206, %v607, 0
      %v621 = vsel %vm206, %v608, 0
      %v624 = vsel %vm206, %v609, 0
      %v627 = vsel %vm206, %v610, 0
      %v630 = vsel %vm206, %v611, 0
      %v633 = vsel %vm206, %v612, 0
      %v636 = vsel %vm206, %v613, 0
      %v639 = vsel %vm206, %v614, 0
      %v642 = vsel %vm223, %v616, 0
      %644 = vmatprep.subr.mxu0 0.0
      %645 = vmatpush1.msra.mxu0 0.0
      %646 = vmatprep.subr.mxu0 0.0
      %647 = vmatpush1.msra.mxu0 0.0
      %648 = vmatprep.subr.mxu0 0.0
      %649 = vmatpush1.msra.mxu0 0.0
      %650 = vmatprep.subr.mxu0 0.0
      %651 = vmatpush1.msra.mxu0 0.0
      %652 = vmatprep.subr.mxu0 0.0
      %653 = vmatpush1.msra.mxu0 0.0
      %654 = vmatprep.subr.mxu0 0.0
      %655 = vmatpush1.msra.mxu0 0.0
      %656 = vmatprep.subr.mxu0 0.0
      %657 = vmatpush1.msra.mxu0 0.0
      %658 = vmatprep.subr.mxu0 0.0
      %659 = vmatpush1.msra.mxu0 0.0
      %660 = vmatprep.subr.mxu0 0.0
      %661 = vmatpush1.msra.mxu0 0.0
      %662 = vmatprep.subr.mxu0 0.0
      %663 = vmatpush1.msra.mxu0 0.0
      %664 = vmatprep.subr.mxu0 0.0
      %665 = vmatpush1.msra.mxu0 0.0
      %666 = vmatprep.subr.mxu0 0.0
      %667 = vmatpush1.msra.mxu0 0.0
      %668 = vmatprep.subr.mxu0 0.0
      %669 = vmatpush1.msra.mxu0 0.0
      %670 = vmatprep.subr.mxu0 0.0
      %671 = vmatpush1.msra.mxu0 0.0
      %672 = vmatprep.subr.mxu0 0.0
      %673 = vmatpush1.msra.mxu0 0.0
      %674 = vmatprep.subr.mxu0 0.0
      %675 = vmatpush1.msra.mxu0 %v642
      %676 = vmatprep.subr.mxu0 0.0
      %677 = vmatpush2.msra.mxu0 0.0
      %678 = vmatprep.subr.mxu0 0.0
      %679 = vmatpush2.msra.mxu0 0.0
      %680 = vmatprep.subr.mxu0 0.0
      %681 = vmatpush2.msra.mxu0 0.0
      %682 = vmatprep.subr.mxu0 0.0
      %683 = vmatpush2.msra.mxu0 0.0
      %684 = vmatprep.subr.mxu0 0.0
      %685 = vmatpush2.msra.mxu0 0.0
      %686 = vmatprep.subr.mxu0 0.0
      %687 = vmatpush2.msra.mxu0 0.0
      %688 = vmatprep.subr.mxu0 0.0
      %689 = vmatpush2.msra.mxu0 0.0
      %690 = vmatprep.subr.mxu0 0.0
      %691 = vmatpush2.msra.mxu0 0.0
      %692 = vmatprep.subr.mxu0 0.0
      %693 = vmatpush2.msra.mxu0 0.0
      %694 = vmatprep.subr.mxu0 0.0
      %695 = vmatpush2.msra.mxu0 0.0
      %696 = vmatprep.subr.mxu0 0.0
      %697 = vmatpush2.msra.mxu0 0.0
      %698 = vmatprep.subr.mxu0 0.0
      %699 = vmatpush2.msra.mxu0 0.0
      %700 = vmatprep.subr.mxu0 0.0
      %701 = vmatpush2.msra.mxu0 0.0
      %702 = vmatprep.subr.mxu0 0.0
      %703 = vmatpush2.msra.mxu0 0.0
      %704 = vmatprep.subr.mxu0 0.0
      %705 = vmatpush2.msra.mxu0 0.0
      %706 = vmatprep.subr.mxu0 0.0
      %707 = vmatpush2.msra.mxu0 0.0
      %708 = vmatprep.mubr.f32.mxu0 0.0
      %709 = vmatmul.mubr.f32.gmra.mxu0 %v618
      %v710 = vpop.f32.mrf.mxu0
      %v711 = vadd.f32 0.0, %v710
      %v712 = vpop.f32.mrf.mxu0
      %713 = vmatprep.mubr.f32.mxu0 0.0
      %714 = vmatmul.mubr.f32.gmra.mxu0 %v621
      %v715 = vpop.f32.mrf.mxu0
      %v716 = vadd.f32 0.0, %v715
      %v717 = vpop.f32.mrf.mxu0
      %718 = vmatprep.mubr.f32.mxu0 0.0
      %719 = vmatmul.mubr.f32.gmra.mxu0 %v624
      %v720 = vpop.f32.mrf.mxu0
      %v721 = vadd.f32 0.0, %v720
      %v722 = vpop.f32.mrf.mxu0
      %723 = vmatprep.mubr.f32.mxu0 0.0
      %724 = vmatmul.mubr.f32.gmra.mxu0 %v627
      %v725 = vpop.f32.mrf.mxu0
      %v726 = vadd.f32 0.0, %v725
      %v727 = vpop.f32.mrf.mxu0
      %728 = vmatprep.mubr.f32.mxu0 0.0
      %729 = vmatmul.mubr.f32.gmra.mxu0 %v630
      %v730 = vpop.f32.mrf.mxu0
      %v731 = vadd.f32 0.0, %v730
      %v732 = vpop.f32.mrf.mxu0
      %733 = vmatprep.mubr.f32.mxu0 0.0
      %734 = vmatmul.mubr.f32.gmra.mxu0 %v633
      %v735 = vpop.f32.mrf.mxu0
      %v736 = vadd.f32 0.0, %v735
      %v737 = vpop.f32.mrf.mxu0
      %738 = vmatprep.mubr.f32.mxu0 0.0
      %739 = vmatmul.mubr.f32.gmra.mxu0 %v636
      %v740 = vpop.f32.mrf.mxu0
      %v741 = vadd.f32 0.0, %v740
      %v742 = vpop.f32.mrf.mxu0
      %743 = vmatprep.mubr.f32.mxu0 0.0
      %744 = vmatmul.mubr.f32.gmra.mxu0 %v639
      %v745 = vpop.f32.mrf.mxu0
      %v746 = vadd.f32 0.0, %v745
      %v747 = vpop.f32.mrf.mxu0
      %748 = vdwg.mxu0
      %v749 = vadd.f32 %v598, %v711
      %v750 = vadd.f32 %v599, %v716
      %v751 = vadd.f32 %v600, %v721
      %v752 = vadd.f32 %v601, %v726
      %v753 = vadd.f32 %v602, %v731
      %v754 = vadd.f32 %v603, %v736
      %v755 = vadd.f32 %v604, %v741
      %v756 = vadd.f32 %v605, %v746
      %s757 = scalar_lea.vmem %s1, 16
      %v758 = vld [vmem:[%s757] sm:$0xf]
      %759 = vrot.lane.b32.xlu0 %v607, 124
      %v760 = vpop.permute.xlu0 %759
      %761 = vrot.lane.b32.xlu0 %v608, 124
      %v762 = vpop.permute.xlu0 %761
      %763 = vrot.lane.b32.xlu0 %v609, 124
      %v764 = vpop.permute.xlu0 %763
      %765 = vrot.lane.b32.xlu0 %v610, 124
      %v766 = vpop.permute.xlu0 %765
      %767 = vrot.lane.b32.xlu0 %v611, 124
      %v768 = vpop.permute.xlu0 %767
      %769 = vrot.lane.b32.xlu0 %v612, 124
      %v770 = vpop.permute.xlu0 %769
      %771 = vrot.lane.b32.xlu0 %v613, 124
      %v772 = vpop.permute.xlu0 %771
      %773 = vrot.lane.b32.xlu0 %v614, 124
      %v774 = vpop.permute.xlu0 %773
      %v775 = vsel %vm206, %v760, 0
      %v777 = vsel %vm206, %v762, 0
      %v779 = vsel %vm206, %v764, 0
      %v781 = vsel %vm206, %v766, 0
      %v783 = vsel %vm206, %v768, 0
      %v785 = vsel %vm206, %v770, 0
      %v787 = vsel %vm206, %v772, 0
      %v789 = vsel %vm206, %v774, 0
      %v792 = vsel %vm223, %v758, 0
      %794 = vmatprep.subr.mxu0 0.0
      %795 = vmatpush1.msra.mxu0 0.0
      %796 = vmatprep.subr.mxu0 0.0
      %797 = vmatpush1.msra.mxu0 0.0
      %798 = vmatprep.subr.mxu0 0.0
      %799 = vmatpush1.msra.mxu0 0.0
      %800 = vmatprep.subr.mxu0 0.0
      %801 = vmatpush1.msra.mxu0 0.0
      %802 = vmatprep.subr.mxu0 0.0
      %803 = vmatpush1.msra.mxu0 0.0
      %804 = vmatprep.subr.mxu0 0.0
      %805 = vmatpush1.msra.mxu0 0.0
      %806 = vmatprep.subr.mxu0 0.0
      %807 = vmatpush1.msra.mxu0 0.0
      %808 = vmatprep.subr.mxu0 0.0
      %809 = vmatpush1.msra.mxu0 0.0
      %810 = vmatprep.subr.mxu0 0.0
      %811 = vmatpush1.msra.mxu0 0.0
      %812 = vmatprep.subr.mxu0 0.0
      %813 = vmatpush1.msra.mxu0 0.0
      %814 = vmatprep.subr.mxu0 0.0
      %815 = vmatpush1.msra.mxu0 0.0
      %816 = vmatprep.subr.mxu0 0.0
      %817 = vmatpush1.msra.mxu0 0.0
      %818 = vmatprep.subr.mxu0 0.0
      %819 = vmatpush1.msra.mxu0 0.0
      %820 = vmatprep.subr.mxu0 0.0
      %821 = vmatpush1.msra.mxu0 0.0
      %822 = vmatprep.subr.mxu0 0.0
      %823 = vmatpush1.msra.mxu0 0.0
      %824 = vmatprep.subr.mxu0 0.0
      %825 = vmatpush1.msra.mxu0 %v792
      %826 = vmatprep.subr.mxu0 0.0
      %827 = vmatpush2.msra.mxu0 0.0
      %828 = vmatprep.subr.mxu0 0.0
      %829 = vmatpush2.msra.mxu0 0.0
      %830 = vmatprep.subr.mxu0 0.0
      %831 = vmatpush2.msra.mxu0 0.0
      %832 = vmatprep.subr.mxu0 0.0
      %833 = vmatpush2.msra.mxu0 0.0
      %834 = vmatprep.subr.mxu0 0.0
      %835 = vmatpush2.msra.mxu0 0.0
      %836 = vmatprep.subr.mxu0 0.0
      %837 = vmatpush2.msra.mxu0 0.0
      %838 = vmatprep.subr.mxu0 0.0
      %839 = vmatpush2.msra.mxu0 0.0
      %840 = vmatprep.subr.mxu0 0.0
      %841 = vmatpush2.msra.mxu0 0.0
      %842 = vmatprep.subr.mxu0 0.0
      %843 = vmatpush2.msra.mxu0 0.0
      %844 = vmatprep.subr.mxu0 0.0
      %845 = vmatpush2.msra.mxu0 0.0
      %846 = vmatprep.subr.mxu0 0.0
      %847 = vmatpush2.msra.mxu0 0.0
      %848 = vmatprep.subr.mxu0 0.0
      %849 = vmatpush2.msra.mxu0 0.0
      %850 = vmatprep.subr.mxu0 0.0
      %851 = vmatpush2.msra.mxu0 0.0
      %852 = vmatprep.subr.mxu0 0.0
      %853 = vmatpush2.msra.mxu0 0.0
      %854 = vmatprep.subr.mxu0 0.0
      %855 = vmatpush2.msra.mxu0 0.0
      %856 = vmatprep.subr.mxu0 0.0
      %857 = vmatpush2.msra.mxu0 0.0
      %858 = vmatprep.mubr.f32.mxu0 0.0
      %859 = vmatmul.mubr.f32.gmra.mxu0 %v775
      %v860 = vpop.f32.mrf.mxu0
      %v861 = vadd.f32 0.0, %v860
      %v862 = vpop.f32.mrf.mxu0
      %863 = vmatprep.mubr.f32.mxu0 0.0
      %864 = vmatmul.mubr.f32.gmra.mxu0 %v777
      %v865 = vpop.f32.mrf.mxu0
      %v866 = vadd.f32 0.0, %v865
      %v867 = vpop.f32.mrf.mxu0
      %868 = vmatprep.mubr.f32.mxu0 0.0
      %869 = vmatmul.mubr.f32.gmra.mxu0 %v779
      %v870 = vpop.f32.mrf.mxu0
      %v871 = vadd.f32 0.0, %v870
      %v872 = vpop.f32.mrf.mxu0
      %873 = vmatprep.mubr.f32.mxu0 0.0
      %874 = vmatmul.mubr.f32.gmra.mxu0 %v781
      %v875 = vpop.f32.mrf.mxu0
      %v876 = vadd.f32 0.0, %v875
      %v877 = vpop.f32.mrf.mxu0
      %878 = vmatprep.mubr.f32.mxu0 0.0
      %879 = vmatmul.mubr.f32.gmra.mxu0 %v783
      %v880 = vpop.f32.mrf.mxu0
      %v881 = vadd.f32 0.0, %v880
      %v882 = vpop.f32.mrf.mxu0
      %883 = vmatprep.mubr.f32.mxu0 0.0
      %884 = vmatmul.mubr.f32.gmra.mxu0 %v785
      %v885 = vpop.f32.mrf.mxu0
      %v886 = vadd.f32 0.0, %v885
      %v887 = vpop.f32.mrf.mxu0
      %888 = vmatprep.mubr.f32.mxu0 0.0
      %889 = vmatmul.mubr.f32.gmra.mxu0 %v787
      %v890 = vpop.f32.mrf.mxu0
      %v891 = vadd.f32 0.0, %v890
      %v892 = vpop.f32.mrf.mxu0
      %893 = vmatprep.mubr.f32.mxu0 0.0
      %894 = vmatmul.mubr.f32.gmra.mxu0 %v789
      %v895 = vpop.f32.mrf.mxu0
      %v896 = vadd.f32 0.0, %v895
      %v897 = vpop.f32.mrf.mxu0
      %898 = vdwg.mxu0
      %v899 = vadd.f32 %v749, %v861
      %v900 = vadd.f32 %v750, %v866
      %v901 = vadd.f32 %v751, %v871
      %v902 = vadd.f32 %v752, %v876
      %v903 = vadd.f32 %v753, %v881
      %v904 = vadd.f32 %v754, %v886
      %v905 = vadd.f32 %v755, %v891
      %v906 = vadd.f32 %v756, %v896
      %v907 = vld [vmem:[%s606 + $0x1] sm:$0xff]
      %v908 = vld [vmem:[%s606 + $0x21] sm:$0xff]
      %v909 = vld [vmem:[%s606 + $0x41] sm:$0xff]
      %v910 = vld [vmem:[%s606 + $0x61] sm:$0xff]
      %v911 = vld [vmem:[%s606 + $0x81] sm:$0xff]
      %v912 = vld [vmem:[%s606 + $0xa1] sm:$0xff]
      %v913 = vld [vmem:[%s606 + $0xc1] sm:$0xff]
      %v914 = vld [vmem:[%s606 + $0xe1] sm:$0xff]
      %s915 = scalar_lea.vmem %s1, 20
      %v916 = vld [vmem:[%s915] sm:$0xf]
      %v918 = vsel %vm206, %v907, 0
      %v921 = vsel %vm206, %v908, 0
      %v924 = vsel %vm206, %v909, 0
      %v927 = vsel %vm206, %v910, 0
      %v930 = vsel %vm206, %v911, 0
      %v933 = vsel %vm206, %v912, 0
      %v936 = vsel %vm206, %v913, 0
      %v939 = vsel %vm206, %v914, 0
      %v942 = vsel %vm223, %v916, 0
      %944 = vmatprep.subr.mxu0 0.0
      %945 = vmatpush1.msra.mxu0 0.0
      %946 = vmatprep.subr.mxu0 0.0
      %947 = vmatpush1.msra.mxu0 0.0
      %948 = vmatprep.subr.mxu0 0.0
      %949 = vmatpush1.msra.mxu0 0.0
      %950 = vmatprep.subr.mxu0 0.0
      %951 = vmatpush1.msra.mxu0 0.0
      %952 = vmatprep.subr.mxu0 0.0
      %953 = vmatpush1.msra.mxu0 0.0
      %954 = vmatprep.subr.mxu0 0.0
      %955 = vmatpush1.msra.mxu0 0.0
      %956 = vmatprep.subr.mxu0 0.0
      %957 = vmatpush1.msra.mxu0 0.0
      %958 = vmatprep.subr.mxu0 0.0
      %959 = vmatpush1.msra.mxu0 0.0
      %960 = vmatprep.subr.mxu0 0.0
      %961 = vmatpush1.msra.mxu0 0.0
      %962 = vmatprep.subr.mxu0 0.0
      %963 = vmatpush1.msra.mxu0 0.0
      %964 = vmatprep.subr.mxu0 0.0
      %965 = vmatpush1.msra.mxu0 0.0
      %966 = vmatprep.subr.mxu0 0.0
      %967 = vmatpush1.msra.mxu0 0.0
      %968 = vmatprep.subr.mxu0 0.0
      %969 = vmatpush1.msra.mxu0 0.0
      %970 = vmatprep.subr.mxu0 0.0
      %971 = vmatpush1.msra.mxu0 0.0
      %972 = vmatprep.subr.mxu0 0.0
      %973 = vmatpush1.msra.mxu0 0.0
      %974 = vmatprep.subr.mxu0 0.0
      %975 = vmatpush1.msra.mxu0 %v942
      %976 = vmatprep.subr.mxu0 0.0
      %977 = vmatpush2.msra.mxu0 0.0
      %978 = vmatprep.subr.mxu0 0.0
      %979 = vmatpush2.msra.mxu0 0.0
      %980 = vmatprep.subr.mxu0 0.0
      %981 = vmatpush2.msra.mxu0 0.0
      %982 = vmatprep.subr.mxu0 0.0
      %983 = vmatpush2.msra.mxu0 0.0
      %984 = vmatprep.subr.mxu0 0.0
      %985 = vmatpush2.msra.mxu0 0.0
      %986 = vmatprep.subr.mxu0 0.0
      %987 = vmatpush2.msra.mxu0 0.0
      %988 = vmatprep.subr.mxu0 0.0
      %989 = vmatpush2.msra.mxu0 0.0
      %990 = vmatprep.subr.mxu0 0.0
      %991 = vmatpush2.msra.mxu0 0.0
      %992 = vmatprep.subr.mxu0 0.0
      %993 = vmatpush2.msra.mxu0 0.0
      %994 = vmatprep.subr.mxu0 0.0
      %995 = vmatpush2.msra.mxu0 0.0
      %996 = vmatprep.subr.mxu0 0.0
      %997 = vmatpush2.msra.mxu0 0.0
      %998 = vmatprep.subr.mxu0 0.0
      %999 = vmatpush2.msra.mxu0 0.0
      %1000 = vmatprep.subr.mxu0 0.0
      %1001 = vmatpush2.msra.mxu0 0.0
      %1002 = vmatprep.subr.mxu0 0.0
      %1003 = vmatpush2.msra.mxu0 0.0
      %1004 = vmatprep.subr.mxu0 0.0
      %1005 = vmatpush2.msra.mxu0 0.0
      %1006 = vmatprep.subr.mxu0 0.0
      %1007 = vmatpush2.msra.mxu0 0.0
      %1008 = vmatprep.mubr.f32.mxu0 0.0
      %1009 = vmatmul.mubr.f32.gmra.mxu0 %v918
      %v1010 = vpop.f32.mrf.mxu0
      %v1011 = vadd.f32 0.0, %v1010
      %v1012 = vpop.f32.mrf.mxu0
      %1013 = vmatprep.mubr.f32.mxu0 0.0
      %1014 = vmatmul.mubr.f32.gmra.mxu0 %v921
      %v1015 = vpop.f32.mrf.mxu0
      %v1016 = vadd.f32 0.0, %v1015
      %v1017 = vpop.f32.mrf.mxu0
      %1018 = vmatprep.mubr.f32.mxu0 0.0
      %1019 = vmatmul.mubr.f32.gmra.mxu0 %v924
      %v1020 = vpop.f32.mrf.mxu0
      %v1021 = vadd.f32 0.0, %v1020
      %v1022 = vpop.f32.mrf.mxu0
      %1023 = vmatprep.mubr.f32.mxu0 0.0
      %1024 = vmatmul.mubr.f32.gmra.mxu0 %v927
      %v1025 = vpop.f32.mrf.mxu0
      %v1026 = vadd.f32 0.0, %v1025
      %v1027 = vpop.f32.mrf.mxu0
      %1028 = vmatprep.mubr.f32.mxu0 0.0
      %1029 = vmatmul.mubr.f32.gmra.mxu0 %v930
      %v1030 = vpop.f32.mrf.mxu0
      %v1031 = vadd.f32 0.0, %v1030
      %v1032 = vpop.f32.mrf.mxu0
      %1033 = vmatprep.mubr.f32.mxu0 0.0
      %1034 = vmatmul.mubr.f32.gmra.mxu0 %v933
      %v1035 = vpop.f32.mrf.mxu0
      %v1036 = vadd.f32 0.0, %v1035
      %v1037 = vpop.f32.mrf.mxu0
      %1038 = vmatprep.mubr.f32.mxu0 0.0
      %1039 = vmatmul.mubr.f32.gmra.mxu0 %v936
      %v1040 = vpop.f32.mrf.mxu0
      %v1041 = vadd.f32 0.0, %v1040
      %v1042 = vpop.f32.mrf.mxu0
      %1043 = vmatprep.mubr.f32.mxu0 0.0
      %1044 = vmatmul.mubr.f32.gmra.mxu0 %v939
      %v1045 = vpop.f32.mrf.mxu0
      %v1046 = vadd.f32 0.0, %v1045
      %v1047 = vpop.f32.mrf.mxu0
      %1048 = vdwg.mxu0
      %v1049 = vadd.f32 %v899, %v1011
      %v1050 = vadd.f32 %v900, %v1016
      %v1051 = vadd.f32 %v901, %v1021
      %v1052 = vadd.f32 %v902, %v1026
      %v1053 = vadd.f32 %v903, %v1031
      %v1054 = vadd.f32 %v904, %v1036
      %v1055 = vadd.f32 %v905, %v1041
      %v1056 = vadd.f32 %v906, %v1046
      %s1057 = scalar_lea.vmem %s165, 32
      %v1058 = vld [vmem:[%s1057] sm:$0xff]
      %v1059 = vld [vmem:[%s1057 + $0x20] sm:$0xff]
      %v1060 = vld [vmem:[%s1057 + $0x40] sm:$0xff]
      %v1061 = vld [vmem:[%s1057 + $0x60] sm:$0xff]
      %v1062 = vld [vmem:[%s1057 + $0x80] sm:$0xff]
      %v1063 = vld [vmem:[%s1057 + $0xa0] sm:$0xff]
      %v1064 = vld [vmem:[%s1057 + $0xc0] sm:$0xff]
      %v1065 = vld [vmem:[%s1057 + $0xe0] sm:$0xff]
      %s1066 = scalar_lea.vmem %s1, 24
      %v1067 = vld [vmem:[%s1066] sm:$0xf]
      %v1069 = vsel %vm206, %v1058, 0
      %v1072 = vsel %vm206, %v1059, 0
      %v1075 = vsel %vm206, %v1060, 0
      %v1078 = vsel %vm206, %v1061, 0
      %v1081 = vsel %vm206, %v1062, 0
      %v1084 = vsel %vm206, %v1063, 0
      %v1087 = vsel %vm206, %v1064, 0
      %v1090 = vsel %vm206, %v1065, 0
      %v1093 = vsel %vm223, %v1067, 0
      %1095 = vmatprep.subr.mxu0 0.0
      %1096 = vmatpush1.msra.mxu0 0.0
      %1097 = vmatprep.subr.mxu0 0.0
      %1098 = vmatpush1.msra.mxu0 0.0
      %1099 = vmatprep.subr.mxu0 0.0
      %1100 = vmatpush1.msra.mxu0 0.0
      %1101 = vmatprep.subr.mxu0 0.0
      %1102 = vmatpush1.msra.mxu0 0.0
      %1103 = vmatprep.subr.mxu0 0.0
      %1104 = vmatpush1.msra.mxu0 0.0
      %1105 = vmatprep.subr.mxu0 0.0
      %1106 = vmatpush1.msra.mxu0 0.0
      %1107 = vmatprep.subr.mxu0 0.0
      %1108 = vmatpush1.msra.mxu0 0.0
      %1109 = vmatprep.subr.mxu0 0.0
      %1110 = vmatpush1.msra.mxu0 0.0
      %1111 = vmatprep.subr.mxu0 0.0
      %1112 = vmatpush1.msra.mxu0 0.0
      %1113 = vmatprep.subr.mxu0 0.0
      %1114 = vmatpush1.msra.mxu0 0.0
      %1115 = vmatprep.subr.mxu0 0.0
      %1116 = vmatpush1.msra.mxu0 0.0
      %1117 = vmatprep.subr.mxu0 0.0
      %1118 = vmatpush1.msra.mxu0 0.0
      %1119 = vmatprep.subr.mxu0 0.0
      %1120 = vmatpush1.msra.mxu0 0.0
      %1121 = vmatprep.subr.mxu0 0.0
      %1122 = vmatpush1.msra.mxu0 0.0
      %1123 = vmatprep.subr.mxu0 0.0
      %1124 = vmatpush1.msra.mxu0 0.0
      %1125 = vmatprep.subr.mxu0 0.0
      %1126 = vmatpush1.msra.mxu0 %v1093
      %1127 = vmatprep.subr.mxu0 0.0
      %1128 = vmatpush2.msra.mxu0 0.0
      %1129 = vmatprep.subr.mxu0 0.0
      %1130 = vmatpush2.msra.mxu0 0.0
      %1131 = vmatprep.subr.mxu0 0.0
      %1132 = vmatpush2.msra.mxu0 0.0
      %1133 = vmatprep.subr.mxu0 0.0
      %1134 = vmatpush2.msra.mxu0 0.0
      %1135 = vmatprep.subr.mxu0 0.0
      %1136 = vmatpush2.msra.mxu0 0.0
      %1137 = vmatprep.subr.mxu0 0.0
      %1138 = vmatpush2.msra.mxu0 0.0
      %1139 = vmatprep.subr.mxu0 0.0
      %1140 = vmatpush2.msra.mxu0 0.0
      %1141 = vmatprep.subr.mxu0 0.0
      %1142 = vmatpush2.msra.mxu0 0.0
      %1143 = vmatprep.subr.mxu0 0.0
      %1144 = vmatpush2.msra.mxu0 0.0
      %1145 = vmatprep.subr.mxu0 0.0
      %1146 = vmatpush2.msra.mxu0 0.0
      %1147 = vmatprep.subr.mxu0 0.0
      %1148 = vmatpush2.msra.mxu0 0.0
      %1149 = vmatprep.subr.mxu0 0.0
      %1150 = vmatpush2.msra.mxu0 0.0
      %1151 = vmatprep.subr.mxu0 0.0
      %1152 = vmatpush2.msra.mxu0 0.0
      %1153 = vmatprep.subr.mxu0 0.0
      %1154 = vmatpush2.msra.mxu0 0.0
      %1155 = vmatprep.subr.mxu0 0.0
      %1156 = vmatpush2.msra.mxu0 0.0
      %1157 = vmatprep.subr.mxu0 0.0
      %1158 = vmatpush2.msra.mxu0 0.0
      %1159 = vmatprep.mubr.f32.mxu0 0.0
      %1160 = vmatmul.mubr.f32.gmra.mxu0 %v1069
      %v1161 = vpop.f32.mrf.mxu0
      %v1162 = vadd.f32 0.0, %v1161
      %v1163 = vpop.f32.mrf.mxu0
      %1164 = vmatprep.mubr.f32.mxu0 0.0
      %1165 = vmatmul.mubr.f32.gmra.mxu0 %v1072
      %v1166 = vpop.f32.mrf.mxu0
      %v1167 = vadd.f32 0.0, %v1166
      %v1168 = vpop.f32.mrf.mxu0
      %1169 = vmatprep.mubr.f32.mxu0 0.0
      %1170 = vmatmul.mubr.f32.gmra.mxu0 %v1075
      %v1171 = vpop.f32.mrf.mxu0
      %v1172 = vadd.f32 0.0, %v1171
      %v1173 = vpop.f32.mrf.mxu0
      %1174 = vmatprep.mubr.f32.mxu0 0.0
      %1175 = vmatmul.mubr.f32.gmra.mxu0 %v1078
      %v1176 = vpop.f32.mrf.mxu0
      %v1177 = vadd.f32 0.0, %v1176
      %v1178 = vpop.f32.mrf.mxu0
      %1179 = vmatprep.mubr.f32.mxu0 0.0
      %1180 = vmatmul.mubr.f32.gmra.mxu0 %v1081
      %v1181 = vpop.f32.mrf.mxu0
      %v1182 = vadd.f32 0.0, %v1181
      %v1183 = vpop.f32.mrf.mxu0
      %1184 = vmatprep.mubr.f32.mxu0 0.0
      %1185 = vmatmul.mubr.f32.gmra.mxu0 %v1084
      %v1186 = vpop.f32.mrf.mxu0
      %v1187 = vadd.f32 0.0, %v1186
      %v1188 = vpop.f32.mrf.mxu0
      %1189 = vmatprep.mubr.f32.mxu0 0.0
      %1190 = vmatmul.mubr.f32.gmra.mxu0 %v1087
      %v1191 = vpop.f32.mrf.mxu0
      %v1192 = vadd.f32 0.0, %v1191
      %v1193 = vpop.f32.mrf.mxu0
      %1194 = vmatprep.mubr.f32.mxu0 0.0
      %1195 = vmatmul.mubr.f32.gmra.mxu0 %v1090
      %v1196 = vpop.f32.mrf.mxu0
      %v1197 = vadd.f32 0.0, %v1196
      %v1198 = vpop.f32.mrf.mxu0
      %1199 = vdwg.mxu0
      %v1200 = vadd.f32 %v1049, %v1162
      %v1201 = vadd.f32 %v1050, %v1167
      %v1202 = vadd.f32 %v1051, %v1172
      %v1203 = vadd.f32 %v1052, %v1177
      %v1204 = vadd.f32 %v1053, %v1182
      %v1205 = vadd.f32 %v1054, %v1187
      %v1206 = vadd.f32 %v1055, %v1192
      %v1207 = vadd.f32 %v1056, %v1197
      %s1208 = scalar_lea.vmem %s1, 28
      %v1209 = vld [vmem:[%s1208] sm:$0xf]
      %1210 = vrot.lane.b32.xlu0 %v1058, 124
      %v1211 = vpop.permute.xlu0 %1210
      %1212 = vrot.lane.b32.xlu0 %v1059, 124
      %v1213 = vpop.permute.xlu0 %1212
      %1214 = vrot.lane.b32.xlu0 %v1060, 124
      %v1215 = vpop.permute.xlu0 %1214
      %1216 = vrot.lane.b32.xlu0 %v1061, 124
      %v1217 = vpop.permute.xlu0 %1216
      %1218 = vrot.lane.b32.xlu0 %v1062, 124
      %v1219 = vpop.permute.xlu0 %1218
      %1220 = vrot.lane.b32.xlu0 %v1063, 124
      %v1221 = vpop.permute.xlu0 %1220
      %1222 = vrot.lane.b32.xlu0 %v1064, 124
      %v1223 = vpop.permute.xlu0 %1222
      %1224 = vrot.lane.b32.xlu0 %v1065, 124
      %v1225 = vpop.permute.xlu0 %1224
      %v1226 = vsel %vm206, %v1211, 0
      %v1228 = vsel %vm206, %v1213, 0
      %v1230 = vsel %vm206, %v1215, 0
      %v1232 = vsel %vm206, %v1217, 0
      %v1234 = vsel %vm206, %v1219, 0
      %v1236 = vsel %vm206, %v1221, 0
      %v1238 = vsel %vm206, %v1223, 0
      %v1240 = vsel %vm206, %v1225, 0
      %v1243 = vsel %vm223, %v1209, 0
      %1245 = vmatprep.subr.mxu0 0.0
      %1246 = vmatpush1.msra.mxu0 0.0
      %1247 = vmatprep.subr.mxu0 0.0
      %1248 = vmatpush1.msra.mxu0 0.0
      %1249 = vmatprep.subr.mxu0 0.0
      %1250 = vmatpush1.msra.mxu0 0.0
      %1251 = vmatprep.subr.mxu0 0.0
      %1252 = vmatpush1.msra.mxu0 0.0
      %1253 = vmatprep.subr.mxu0 0.0
      %1254 = vmatpush1.msra.mxu0 0.0
      %1255 = vmatprep.subr.mxu0 0.0
      %1256 = vmatpush1.msra.mxu0 0.0
      %1257 = vmatprep.subr.mxu0 0.0
      %1258 = vmatpush1.msra.mxu0 0.0
      %1259 = vmatprep.subr.mxu0 0.0
      %1260 = vmatpush1.msra.mxu0 0.0
      %1261 = vmatprep.subr.mxu0 0.0
      %1262 = vmatpush1.msra.mxu0 0.0
      %1263 = vmatprep.subr.mxu0 0.0
      %1264 = vmatpush1.msra.mxu0 0.0
      %1265 = vmatprep.subr.mxu0 0.0
      %1266 = vmatpush1.msra.mxu0 0.0
      %1267 = vmatprep.subr.mxu0 0.0
      %1268 = vmatpush1.msra.mxu0 0.0
      %1269 = vmatprep.subr.mxu0 0.0
      %1270 = vmatpush1.msra.mxu0 0.0
      %1271 = vmatprep.subr.mxu0 0.0
      %1272 = vmatpush1.msra.mxu0 0.0
      %1273 = vmatprep.subr.mxu0 0.0
      %1274 = vmatpush1.msra.mxu0 0.0
      %1275 = vmatprep.subr.mxu0 0.0
      %1276 = vmatpush1.msra.mxu0 %v1243
      %1277 = vmatprep.subr.mxu0 0.0
      %1278 = vmatpush2.msra.mxu0 0.0
      %1279 = vmatprep.subr.mxu0 0.0
      %1280 = vmatpush2.msra.mxu0 0.0
      %1281 = vmatprep.subr.mxu0 0.0
      %1282 = vmatpush2.msra.mxu0 0.0
      %1283 = vmatprep.subr.mxu0 0.0
      %1284 = vmatpush2.msra.mxu0 0.0
      %1285 = vmatprep.subr.mxu0 0.0
      %1286 = vmatpush2.msra.mxu0 0.0
      %1287 = vmatprep.subr.mxu0 0.0
      %1288 = vmatpush2.msra.mxu0 0.0
      %1289 = vmatprep.subr.mxu0 0.0
      %1290 = vmatpush2.msra.mxu0 0.0
      %1291 = vmatprep.subr.mxu0 0.0
      %1292 = vmatpush2.msra.mxu0 0.0
      %1293 = vmatprep.subr.mxu0 0.0
      %1294 = vmatpush2.msra.mxu0 0.0
      %1295 = vmatprep.subr.mxu0 0.0
      %1296 = vmatpush2.msra.mxu0 0.0
      %1297 = vmatprep.subr.mxu0 0.0
      %1298 = vmatpush2.msra.mxu0 0.0
      %1299 = vmatprep.subr.mxu0 0.0
      %1300 = vmatpush2.msra.mxu0 0.0
      %1301 = vmatprep.subr.mxu0 0.0
      %1302 = vmatpush2.msra.mxu0 0.0
      %1303 = vmatprep.subr.mxu0 0.0
      %1304 = vmatpush2.msra.mxu0 0.0
      %1305 = vmatprep.subr.mxu0 0.0
      %1306 = vmatpush2.msra.mxu0 0.0
      %1307 = vmatprep.subr.mxu0 0.0
      %1308 = vmatpush2.msra.mxu0 0.0
      %1309 = vmatprep.mubr.f32.mxu0 0.0
      %1310 = vmatmul.mubr.f32.gmra.mxu0 %v1226
      %v1311 = vpop.f32.mrf.mxu0
      %v1312 = vadd.f32 0.0, %v1311
      %v1313 = vpop.f32.mrf.mxu0
      %1314 = vmatprep.mubr.f32.mxu0 0.0
      %1315 = vmatmul.mubr.f32.gmra.mxu0 %v1228
      %v1316 = vpop.f32.mrf.mxu0
      %v1317 = vadd.f32 0.0, %v1316
      %v1318 = vpop.f32.mrf.mxu0
      %1319 = vmatprep.mubr.f32.mxu0 0.0
      %1320 = vmatmul.mubr.f32.gmra.mxu0 %v1230
      %v1321 = vpop.f32.mrf.mxu0
      %v1322 = vadd.f32 0.0, %v1321
      %v1323 = vpop.f32.mrf.mxu0
      %1324 = vmatprep.mubr.f32.mxu0 0.0
      %1325 = vmatmul.mubr.f32.gmra.mxu0 %v1232
      %v1326 = vpop.f32.mrf.mxu0
      %v1327 = vadd.f32 0.0, %v1326
      %v1328 = vpop.f32.mrf.mxu0
      %1329 = vmatprep.mubr.f32.mxu0 0.0
      %1330 = vmatmul.mubr.f32.gmra.mxu0 %v1234
      %v1331 = vpop.f32.mrf.mxu0
      %v1332 = vadd.f32 0.0, %v1331
      %v1333 = vpop.f32.mrf.mxu0
      %1334 = vmatprep.mubr.f32.mxu0 0.0
      %1335 = vmatmul.mubr.f32.gmra.mxu0 %v1236
      %v1336 = vpop.f32.mrf.mxu0
      %v1337 = vadd.f32 0.0, %v1336
      %v1338 = vpop.f32.mrf.mxu0
      %1339 = vmatprep.mubr.f32.mxu0 0.0
      %1340 = vmatmul.mubr.f32.gmra.mxu0 %v1238
      %v1341 = vpop.f32.mrf.mxu0
      %v1342 = vadd.f32 0.0, %v1341
      %v1343 = vpop.f32.mrf.mxu0
      %1344 = vmatprep.mubr.f32.mxu0 0.0
      %1345 = vmatmul.mubr.f32.gmra.mxu0 %v1240
      %v1346 = vpop.f32.mrf.mxu0
      %v1347 = vadd.f32 0.0, %v1346
      %v1348 = vpop.f32.mrf.mxu0
      %1349 = vdwg.mxu0
      %v1350 = vadd.f32 %v1200, %v1312
      %v1351 = vadd.f32 %v1201, %v1317
      %v1352 = vadd.f32 %v1202, %v1322
      %v1353 = vadd.f32 %v1203, %v1327
      %v1354 = vadd.f32 %v1204, %v1332
      %v1355 = vadd.f32 %v1205, %v1337
      %v1356 = vadd.f32 %v1206, %v1342
      %v1357 = vadd.f32 %v1207, %v1347
      %v1358 = vld [vmem:[%s1057 + $0x1] sm:$0xff]
      %v1359 = vld [vmem:[%s1057 + $0x21] sm:$0xff]
      %v1360 = vld [vmem:[%s1057 + $0x41] sm:$0xff]
      %v1361 = vld [vmem:[%s1057 + $0x61] sm:$0xff]
      %v1362 = vld [vmem:[%s1057 + $0x81] sm:$0xff]
      %v1363 = vld [vmem:[%s1057 + $0xa1] sm:$0xff]
      %v1364 = vld [vmem:[%s1057 + $0xc1] sm:$0xff]
      %v1365 = vld [vmem:[%s1057 + $0xe1] sm:$0xff]
      %s1366 = scalar_lea.vmem %s1, 32
      %v1367 = vld [vmem:[%s1366] sm:$0xf]
      %v1369 = vsel %vm206, %v1358, 0
      %v1372 = vsel %vm206, %v1359, 0
      %v1375 = vsel %vm206, %v1360, 0
      %v1378 = vsel %vm206, %v1361, 0
      %v1381 = vsel %vm206, %v1362, 0
      %v1384 = vsel %vm206, %v1363, 0
      %v1387 = vsel %vm206, %v1364, 0
      %v1390 = vsel %vm206, %v1365, 0
      %v1393 = vsel %vm223, %v1367, 0
      %1395 = vmatprep.subr.mxu0 0.0
      %1396 = vmatpush1.msra.mxu0 0.0
      %1397 = vmatprep.subr.mxu0 0.0
      %1398 = vmatpush1.msra.mxu0 0.0
      %1399 = vmatprep.subr.mxu0 0.0
      %1400 = vmatpush1.msra.mxu0 0.0
      %1401 = vmatprep.subr.mxu0 0.0
      %1402 = vmatpush1.msra.mxu0 0.0
      %1403 = vmatprep.subr.mxu0 0.0
      %1404 = vmatpush1.msra.mxu0 0.0
      %1405 = vmatprep.subr.mxu0 0.0
      %1406 = vmatpush1.msra.mxu0 0.0
      %1407 = vmatprep.subr.mxu0 0.0
      %1408 = vmatpush1.msra.mxu0 0.0
      %1409 = vmatprep.subr.mxu0 0.0
      %1410 = vmatpush1.msra.mxu0 0.0
      %1411 = vmatprep.subr.mxu0 0.0
      %1412 = vmatpush1.msra.mxu0 0.0
      %1413 = vmatprep.subr.mxu0 0.0
      %1414 = vmatpush1.msra.mxu0 0.0
      %1415 = vmatprep.subr.mxu0 0.0
      %1416 = vmatpush1.msra.mxu0 0.0
      %1417 = vmatprep.subr.mxu0 0.0
      %1418 = vmatpush1.msra.mxu0 0.0
      %1419 = vmatprep.subr.mxu0 0.0
      %1420 = vmatpush1.msra.mxu0 0.0
      %1421 = vmatprep.subr.mxu0 0.0
      %1422 = vmatpush1.msra.mxu0 0.0
      %1423 = vmatprep.subr.mxu0 0.0
      %1424 = vmatpush1.msra.mxu0 0.0
      %1425 = vmatprep.subr.mxu0 0.0
      %1426 = vmatpush1.msra.mxu0 %v1393
      %1427 = vmatprep.subr.mxu0 0.0
      %1428 = vmatpush2.msra.mxu0 0.0
      %1429 = vmatprep.subr.mxu0 0.0
      %1430 = vmatpush2.msra.mxu0 0.0
      %1431 = vmatprep.subr.mxu0 0.0
      %1432 = vmatpush2.msra.mxu0 0.0
      %1433 = vmatprep.subr.mxu0 0.0
      %1434 = vmatpush2.msra.mxu0 0.0
      %1435 = vmatprep.subr.mxu0 0.0
      %1436 = vmatpush2.msra.mxu0 0.0
      %1437 = vmatprep.subr.mxu0 0.0
      %1438 = vmatpush2.msra.mxu0 0.0
      %1439 = vmatprep.subr.mxu0 0.0
      %1440 = vmatpush2.msra.mxu0 0.0
      %1441 = vmatprep.subr.mxu0 0.0
      %1442 = vmatpush2.msra.mxu0 0.0
      %1443 = vmatprep.subr.mxu0 0.0
      %1444 = vmatpush2.msra.mxu0 0.0
      %1445 = vmatprep.subr.mxu0 0.0
      %1446 = vmatpush2.msra.mxu0 0.0
      %1447 = vmatprep.subr.mxu0 0.0
      %1448 = vmatpush2.msra.mxu0 0.0
      %1449 = vmatprep.subr.mxu0 0.0
      %1450 = vmatpush2.msra.mxu0 0.0
      %1451 = vmatprep.subr.mxu0 0.0
      %1452 = vmatpush2.msra.mxu0 0.0
      %1453 = vmatprep.subr.mxu0 0.0
      %1454 = vmatpush2.msra.mxu0 0.0
      %1455 = vmatprep.subr.mxu0 0.0
      %1456 = vmatpush2.msra.mxu0 0.0
      %1457 = vmatprep.subr.mxu0 0.0
      %1458 = vmatpush2.msra.mxu0 0.0
      %1459 = vmatprep.mubr.f32.mxu0 0.0
      %1460 = vmatmul.mubr.f32.gmra.mxu0 %v1369
      %v1461 = vpop.f32.mrf.mxu0
      %v1462 = vadd.f32 0.0, %v1461
      %v1463 = vpop.f32.mrf.mxu0
      %1464 = vmatprep.mubr.f32.mxu0 0.0
      %1465 = vmatmul.mubr.f32.gmra.mxu0 %v1372
      %v1466 = vpop.f32.mrf.mxu0
      %v1467 = vadd.f32 0.0, %v1466
      %v1468 = vpop.f32.mrf.mxu0
      %1469 = vmatprep.mubr.f32.mxu0 0.0
      %1470 = vmatmul.mubr.f32.gmra.mxu0 %v1375
      %v1471 = vpop.f32.mrf.mxu0
      %v1472 = vadd.f32 0.0, %v1471
      %v1473 = vpop.f32.mrf.mxu0
      %1474 = vmatprep.mubr.f32.mxu0 0.0
      %1475 = vmatmul.mubr.f32.gmra.mxu0 %v1378
      %v1476 = vpop.f32.mrf.mxu0
      %v1477 = vadd.f32 0.0, %v1476
      %v1478 = vpop.f32.mrf.mxu0
      %1479 = vmatprep.mubr.f32.mxu0 0.0
      %1480 = vmatmul.mubr.f32.gmra.mxu0 %v1381
      %v1481 = vpop.f32.mrf.mxu0
      %v1482 = vadd.f32 0.0, %v1481
      %v1483 = vpop.f32.mrf.mxu0
      %1484 = vmatprep.mubr.f32.mxu0 0.0
      %1485 = vmatmul.mubr.f32.gmra.mxu0 %v1384
      %v1486 = vpop.f32.mrf.mxu0
      %v1487 = vadd.f32 0.0, %v1486
      %v1488 = vpop.f32.mrf.mxu0
      %1489 = vmatprep.mubr.f32.mxu0 0.0
      %1490 = vmatmul.mubr.f32.gmra.mxu0 %v1387
      %v1491 = vpop.f32.mrf.mxu0
      %v1492 = vadd.f32 0.0, %v1491
      %v1493 = vpop.f32.mrf.mxu0
      %1494 = vmatprep.mubr.f32.mxu0 0.0
      %1495 = vmatmul.mubr.f32.gmra.mxu0 %v1390
      %v1496 = vpop.f32.mrf.mxu0
      %v1497 = vadd.f32 0.0, %v1496
      %v1498 = vpop.f32.mrf.mxu0
      %1499 = vdwg.mxu0
      %v1500 = vadd.f32 %v1350, %v1462
      %v1501 = vadd.f32 %v1351, %v1467
      %v1502 = vadd.f32 %v1352, %v1472
      %v1503 = vadd.f32 %v1353, %v1477
      %v1504 = vadd.f32 %v1354, %v1482
      %v1505 = vadd.f32 %v1355, %v1487
      %v1506 = vadd.f32 %v1356, %v1492
      %v1507 = vadd.f32 %v1357, %v1497
      %v1508 = vld [vmem:[%s2] sm:$0x1]
      %v1510 = vlaneseq
      %v1511 = vshrl.u32 %v1510, 7
      %v1512 = vsub.s32 0, %v1511
      %v1513 = vrot.slane %v1508, %v1512
      %v1515 = vadd.f32 %v1500, %v1513
      %v1516 = vadd.f32 %v1501, %v1513
      %v1517 = vadd.f32 %v1502, %v1513
      %v1518 = vadd.f32 %v1503, %v1513
      %v1519 = vadd.f32 %v1504, %v1513
      %v1520 = vadd.f32 %v1505, %v1513
      %v1521 = vadd.f32 %v1506, %v1513
      %v1522 = vadd.f32 %v1507, %v1513
      %1523 = vst [vmem:[%s170] sm:$0xff] %v1515
      %1524 = vst [vmem:[%s170 + $0x8] sm:$0xff] %v1516
      %1525 = vst [vmem:[%s170 + $0x10] sm:$0xff] %v1517
      %1526 = vst [vmem:[%s170 + $0x18] sm:$0xff] %v1518
      %1527 = vst [vmem:[%s170 + $0x20] sm:$0xff] %v1519
      %1528 = vst [vmem:[%s170 + $0x28] sm:$0xff] %v1520
      %1529 = vst [vmem:[%s170 + $0x30] sm:$0xff] %v1521
      %1530 = vst [vmem:[%s170 + $0x38] sm:$0xff] %v1522
      %p1531 = scmp.lt.s32.totalorder %s14, 1
      %s1532 = scalar_select %p1531, %s14, 1
      %s1533 = smul.addr %s1532, 8
      %s1534 = smul.addr %s1533, 8
      %s1535 = scalar_lea.vmem %s3, %s1534
      // Predicated region
      $region33: #{downsample_forward.1} parent=31 // pred_check
        %p1536 = pneg %p100
      $region34: #{downsample_forward.1} parent=31 // pred_check_branch
        %1538 = sbr.rel (%p1536) target = $region36
      $region35: #{downsample_forward.1} parent=31 // pred_region
        _
      $region36: #{downsample_forward.1} parent=31 // pred_fallthru
        _
    $region32: #{downsample_forward.1} parent=5 // pred_fallthru
      _
    %p1539 = scmp.le.s32.totalorder 2, %s9
    // Predicated region
    $region37: #{downsample_forward.1} parent=5 // pred_check
      %p1540 = pneg %p1539
    $region38: #{downsample_forward.1} parent=5 // pred_check_branch
      %1542 = sbr.rel (%p1540) target = $region40
    $region39: #{downsample_forward.1} parent=5 // pred_region
      %s1543 = ssub.s32 %s9, 2
      // Predicated region
      $region41: #{downsample_forward.1} parent=39 // pred_check
        %p1544 = pneg %p106
      $region42: #{downsample_forward.1} parent=39 // pred_check_branch
        %1546 = sbr.rel (%p1544) target = $region44
      $region43: #{downsample_forward.1} parent=39 // pred_region
        %p1547 = scmp.lt.s32.totalorder %s15, 1
        %s1548 = scalar_select %p1547, %s15, 1
        %s1549 = smul.addr %s1548, 8
        %s1550 = smul.addr %s1549, 8
        %s1551 = scalar_lea.vmem %s3, %s1550
      $region44: #{downsample_forward.1} parent=39 // pred_fallthru
        _
    $region40: #{downsample_forward.1} parent=5 // pred_fallthru
      _
  $region6: #{downsample_forward.1} parent=0 // loop_footer
    %s13 = sadd.s32 1, %s9
  $region7: #{downsample_forward.1} parent=0 // loop_footer_branch
    %8 = sbr.rel target = $region3
  $region8: #{downsample_forward.1} parent=0 // loop_exit
    _

</llo_original>
